<compile_context>
chip_gen: v6e
topology: v6e:2x2x1
jax: 0.10.0
libtpu: 0.0.40
codegen_flags: <defaults>
</compile_context>

<pallas_src>
import jax
import jax.numpy as jnp
from jax.experimental import pallas as pl
from jax.experimental.pallas import tpu as pltpu


# ---------------------------------------------------------------------------
# Kernels
# ---------------------------------------------------------------------------
def _mlp_body(x_ref, w1_ref, b1_ref, w2_ref, b2_ref, w3_ref, b3_ref):
    # x arrives as f32 straight from HBM (no wrapper cast pass); cast to bf16
    # just before the layer-1 MXU op (a VPU op, hidden under the x-tile DMA).
    x = x_ref[...].astype(jnp.bfloat16)
    # Layer 1: (TB, 2352) bf16 @ (2352, 128) bf16 -> f32 accumulate, + b, ReLU
    h1 = jnp.dot(x, w1_ref[...],
                 preferred_element_type=jnp.float32) + b1_ref[...]
    h1 = jnp.maximum(h1, 0.0)
    # Layer 2: (TB, 128) f32 @ (128, 128) f32
    h2 = jnp.dot(h1, w2_ref[...],
                 preferred_element_type=jnp.float32) + b2_ref[...]
    h2 = jnp.maximum(h2, 0.0)
    # Layer 3: (TB, 128) f32 @ (128, 10) f32 -> logits
    return jnp.dot(h2, w3_ref[...],
                   preferred_element_type=jnp.float32) + b3_ref[...]


def _mlp_softmax_kernel(x_ref, w1_ref, b1_ref, w2_ref, b2_ref, w3_ref, b3_ref,
                        out_ref):
    """Writes one merged (TB, 2*C) block: [softmax(logits) | logits]."""
    logits = _mlp_body(x_ref, w1_ref, b1_ref, w2_ref, b2_ref, w3_ref, b3_ref)
    # Numerically stable softmax over dim=1. Exact division: the kernel is
    # DMA-bound, so the extra VPU work is free and matches PyTorch closely.
    m = jnp.max(logits, axis=1, keepdims=True)
    e = jnp.exp(logits - m)
    probs = e / jnp.sum(e, axis=1, keepdims=True)
    out_ref[...] = jnp.concatenate([probs, logits], axis=1)


def _mlp_logits_kernel(x_ref, w1_ref, b1_ref, w2_ref, b2_ref, w3_ref, b3_ref,
                       logits_ref):
    logits_ref[...] = _mlp_body(x_ref, w1_ref, b1_ref, w2_ref, b2_ref,
                                w3_ref, b3_ref)


# ---------------------------------------------------------------------------
# Wrapper
# ---------------------------------------------------------------------------
def classifier_forward(x_nchw, params, pseudo=None, tb=1024):
    """JAX/Pallas equivalent of Classifier.forward for source='mnist'.

    `params` are the prepared (padded / dtype-converted) parameters from
    `prepare_params`.  `tb` is the batch tile (rows per grid step); 1024
    amortizes per-step overhead while keeping ~27 MiB of VMEM at peak
    (double-buffered f32 x tile + resident weights) — safe on v5e/v6e/v7x
    with the 40 MiB limit below.  Sweep up to 2048 on v5e/v6e if desired
    (raise vmem_limit_bytes accordingly); do NOT on v7x (64 MiB physical).
    """
    w1, b1, w2, b2, w3, b3 = params
    K = w1.shape[0]          # 2352 input features
    H = w1.shape[1]          # 128 padded hidden width
    C = w3.shape[1]          # 10 classes

    B = x_nchw.shape[0]
    # Row-major flatten == x.view(B, -1); contiguous, so this is a free
    # metadata reshape.  NO dtype cast here (done in-kernel) and NO jnp.pad:
    # both would add a full extra HBM pass over the dominant x stream.
    x_flat = x_nchw.reshape(B, -1)

    assert tb % 16 == 0, "tb must be a multiple of 16"
    # Batch tile: multiple of 16 (bf16 sublane packing); small batches collapse
    # to a single tile.  Ragged last block (B % TB != 0) is handled by Pallas:
    # OOB rows read garbage that never reaches valid output rows, OOB writes
    # are discarded.
    TB = tb if B >= tb else max(16, ((B + 15) // 16) * 16)
    n_blocks = pl.cdiv(B, TB)

    in_specs = [
        pl.BlockSpec((TB, K), lambda i: (i, 0)),   # x: tiled along batch
        pl.BlockSpec((K, H), lambda i: (0, 0)),    # w1: VMEM-resident
        pl.BlockSpec((1, H), lambda i: (0, 0)),    # b1: resident
        pl.BlockSpec((H, H), lambda i: (0, 0)),    # w2: resident
        pl.BlockSpec((1, H), lambda i: (0, 0)),    # b2: resident
        pl.BlockSpec((H, C), lambda i: (0, 0)),    # w3: resident
        pl.BlockSpec((1, C), lambda i: (0, 0)),    # b3: resident
    ]
    compiler_params = pltpu.CompilerParams(
        # Batch axis is embarrassingly parallel -> shards across TensorCores
        # on v7x megacore; near-neutral on single-TC v5e/v6e.
        dimension_semantics=("parallel",),
        # Explicit VMEM budget: covers TB=1024 double-buffered f32 x tiles
        # (~19 MiB) + resident weights, below v7x's 64 MiB physical VMEM and
        # above v5e's 16 MiB default scoped limit.
        vmem_limit_bytes=40 * 1024 * 1024,
    )
    operands = (x_flat, w1, b1, w2, b2, w3, b3)

    if pseudo:
        logits = pl.pallas_call(
            _mlp_logits_kernel,
            out_shape=jax.ShapeDtypeStruct((B, C), jnp.float32),
            grid_spec=pltpu.PrefetchScalarGridSpec(
                num_scalar_prefetch=0,
                grid=(n_blocks,),
                in_specs=in_specs,
                out_specs=pl.BlockSpec((TB, C), lambda i: (i, 0))),
            compiler_params=compiler_params,
        )(*operands)
        return logits

    # Single merged output block [probs | logits] -> one output DMA per step.
    merged = pl.pallas_call(
        _mlp_softmax_kernel,
        out_shape=jax.ShapeDtypeStruct((B, 2 * C), jnp.float32),
        grid_spec=pltpu.PrefetchScalarGridSpec(
            num_scalar_prefetch=0,
            grid=(n_blocks,),
            in_specs=in_specs,
            out_specs=pl.BlockSpec((TB, 2 * C), lambda i: (i, 0))),
        compiler_params=compiler_params,
    )(*operands)
    return merged[:, :C], merged[:, C:]


# ---------------------------------------------------------------------------
# Parameter helpers
# ---------------------------------------------------------------------------
def init_params(key):
    """Deterministic init matching PyTorch nn.Linear default
    U(-1/sqrt(fan_in), 1/sqrt(fan_in)). Weights stored (in, out), f32,
    hidden width 100 (un-padded, PyTorch-exact shapes)."""
    dims = [(3 * 28 * 28, 100), (100, 100), (100, 10)]
    params = []
    for (fin, fout) in dims:
        key, kw, kb = jax.random.split(key, 3)
        bound = 1.0 / (fin ** 0.5)
        w = jax.random.uniform(kw, (fin, fout), jnp.float32, -bound, bound)
        b = jax.random.uniform(kb, (1, fout), jnp.float32, -bound, bound)
        params += [w, b]
    return tuple(params)


def prepare_params(raw_params, hidden_pad=128, w1_dtype=jnp.bfloat16):
    """One-time prep (amortized across forward calls): zero-pad the 100-wide
    hidden layers to 128 lanes (mathematical no-op: padded units get 0
    pre-activation, stay 0 through ReLU, contribute nothing downstream) and
    cast w1 to bf16 so layer 1 runs natively on the MXU.
    NOTE: layer-1 numerics are bf16 (documented deviation from f32 PyTorch)."""
    w1, b1, w2, b2, w3, b3 = raw_params
    ph = hidden_pad - w1.shape[1]
    w1p = jnp.pad(w1, ((0, 0), (0, ph))).astype(w1_dtype)
    b1p = jnp.pad(b1, ((0, 0), (0, ph))).astype(jnp.float32)
    w2p = jnp.pad(w2, ((0, ph), (0, ph))).astype(jnp.float32)
    b2p = jnp.pad(b2, ((0, 0), (0, ph))).astype(jnp.float32)
    w3p = jnp.pad(w3, ((0, ph), (0, 0))).astype(jnp.float32)
    return (w1p, b1p, w2p, b2p, w3p, b3.astype(jnp.float32))


# ---------------------------------------------------------------------------
# Self-test
# ---------------------------------------------------------------------------
if __name__ == "__main__":
    key = jax.random.PRNGKey(0)
    key, kx = jax.random.split(key)

    # Input consistent with the 'mnist' branch: (B, 3, 28, 28).
    # B=20 is deliberately NOT a multiple of 16 to exercise the un-padded
    # ragged-last-block path.
    B = 20
    x = jax.random.normal(kx, (B, 3, 28, 28), dtype=jnp.float32)

    raw_params = init_params(key)
    params = prepare_params(raw_params)

    # Default large-tile path (single ragged 32-row tile here).
    probs, logits = classifier_forward(x, params)
    jax.block_until_ready((probs, logits))

    # Multi-step ragged grid: tb=16 -> 2 blocks, last one partial.
    probs2, logits2 = classifier_forward(x, params, tb=16)
    jax.block_until_ready((probs2, logits2))

    # pseudo=True path (logits only).
    logits_only = classifier_forward(x, params, pseudo=True, tb=16)
    jax.block_until_ready(logits_only)

    # Pure-JAX reference with matching bf16 precision on layer 1.
    w1, b1, w2, b2, w3, b3 = raw_params
    x_flat = x.reshape(B, -1)
    h1 = jnp.maximum(
        jnp.dot(x_flat.astype(jnp.bfloat16), w1.astype(jnp.bfloat16),
                preferred_element_type=jnp.float32) + b1, 0.0)
    h2 = jnp.maximum(h1 @ w2 + b2, 0.0)
    ref_logits = h2 @ w3 + b3
    ref_probs = jax.nn.softmax(ref_logits, axis=1)

    for p, l in ((probs, logits), (probs2, logits2)):
        assert p.shape == (B, 10) and l.shape == (B, 10)
        assert jnp.allclose(jnp.sum(p, axis=1), 1.0, atol=1e-4)
        assert jnp.allclose(l, ref_logits, atol=5e-3, rtol=5e-3)
        assert jnp.allclose(p, ref_probs, atol=5e-3, rtol=5e-3)
    assert logits_only.shape == (B, 10)
    assert jnp.allclose(logits_only, ref_logits, atol=5e-3, rtol=5e-3)

    print("KERNEL_OK")
</pallas_src>

<mosaic_0001>
module attributes {stable_mosaic.version = 11 : i64} {
  func.func @_mlp_softmax_kernel(%arg0: i32, %arg1: memref<32x2352xf32, #tpu.memory_space<vmem>>, %arg2: memref<2352x128xbf16, #tpu.memory_space<vmem>>, %arg3: memref<1x128xf32, #tpu.memory_space<vmem>>, %arg4: memref<128x128xf32, #tpu.memory_space<vmem>>, %arg5: memref<1x128xf32, #tpu.memory_space<vmem>>, %arg6: memref<128x10xf32, #tpu.memory_space<vmem>>, %arg7: memref<1x10xf32, #tpu.memory_space<vmem>>, %arg8: memref<32x20xf32, #tpu.memory_space<vmem>>) attributes {dimension_semantics = [#tpu.dimension_semantics<parallel>], iteration_bounds = array<i64: 1>, scalar_prefetch = 0 : i64, scratch_operands = 0 : i64, tpu.core_type = #tpu.core_type<tc>, window_params = [{transform_indices = @transform_0, window_bounds = array<i64: 32, 2352>}, {pipeline_mode = #tpu.pipeline_mode<synchronous>, transform_indices = @transform_1, window_bounds = array<i64: 2352, 128>}, {pipeline_mode = #tpu.pipeline_mode<synchronous>, transform_indices = @transform_2, window_bounds = array<i64: 1, 128>}, {pipeline_mode = #tpu.pipeline_mode<synchronous>, transform_indices = @transform_3, window_bounds = array<i64: 128, 128>}, {pipeline_mode = #tpu.pipeline_mode<synchronous>, transform_indices = @transform_4, window_bounds = array<i64: 1, 128>}, {pipeline_mode = #tpu.pipeline_mode<synchronous>, transform_indices = @transform_5, window_bounds = array<i64: 128, 10>}, {pipeline_mode = #tpu.pipeline_mode<synchronous>, transform_indices = @transform_6, window_bounds = array<i64: 1, 10>}, {transform_indices = @transform_7, window_bounds = array<i64: 32, 20>}]} {
    %c0 = arith.constant 0 : index
    %c0_0 = arith.constant 0 : index
    %0 = vector.load %arg1[%c0, %c0_0] : memref<32x2352xf32, #tpu.memory_space<vmem>>, vector<32x2352xf32>
    %1 = arith.truncf %0 : vector<32x2352xf32> to vector<32x2352xbf16>
    %c0_1 = arith.constant 0 : index
    %c0_2 = arith.constant 0 : index
    %2 = vector.load %arg2[%c0_1, %c0_2] : memref<2352x128xbf16, #tpu.memory_space<vmem>>, vector<2352x128xbf16>
    %cst = arith.constant dense<0.000000e+00> : vector<32x128xf32>
    %3 = tpu.matmul %1, %2, %cst {dimension_numbers = #tpu.dot_dimension_numbers<[1], [0], [0], [1], [0, 0, 1, 1], [], []>} : vector<32x2352xbf16>, vector<2352x128xbf16>, vector<32x128xf32> -> vector<32x128xf32>
    %c0_3 = arith.constant 0 : index
    %c0_4 = arith.constant 0 : index
    %4 = vector.load %arg3[%c0_3, %c0_4] : memref<1x128xf32, #tpu.memory_space<vmem>>, vector<1x128xf32>
    %5 = vector.broadcast %4 : vector<1x128xf32> to vector<32x128xf32>
    %6 = arith.addf %3, %5 : vector<32x128xf32>
    %cst_5 = arith.constant 0.000000e+00 : f32
    %7 = vector.broadcast %cst_5 : f32 to vector<32x128xf32>
    %8 = arith.maximumf %6, %7 : vector<32x128xf32>
    %c0_6 = arith.constant 0 : index
    %c0_7 = arith.constant 0 : index
    %9 = vector.load %arg4[%c0_6, %c0_7] : memref<128x128xf32, #tpu.memory_space<vmem>>, vector<128x128xf32>
    %cst_8 = arith.constant dense<0.000000e+00> : vector<32x128xf32>
    %10 = tpu.matmul %8, %9, %cst_8 {dimension_numbers = #tpu.dot_dimension_numbers<[1], [0], [0], [1], [0, 0, 1, 1], [], []>} : vector<32x128xf32>, vector<128x128xf32>, vector<32x128xf32> -> vector<32x128xf32>
    %c0_9 = arith.constant 0 : index
    %c0_10 = arith.constant 0 : index
    %11 = vector.load %arg5[%c0_9, %c0_10] : memref<1x128xf32, #tpu.memory_space<vmem>>, vector<1x128xf32>
    %12 = vector.broadcast %11 : vector<1x128xf32> to vector<32x128xf32>
    %13 = arith.addf %10, %12 : vector<32x128xf32>
    %cst_11 = arith.constant 0.000000e+00 : f32
    %14 = vector.broadcast %cst_11 : f32 to vector<32x128xf32>
    %15 = arith.maximumf %13, %14 : vector<32x128xf32>
    %c0_12 = arith.constant 0 : index
    %c0_13 = arith.constant 0 : index
    %16 = vector.load %arg6[%c0_12, %c0_13] : memref<128x10xf32, #tpu.memory_space<vmem>>, vector<128x10xf32>
    %cst_14 = arith.constant dense<0.000000e+00> : vector<32x10xf32>
    %17 = tpu.matmul %15, %16, %cst_14 {dimension_numbers = #tpu.dot_dimension_numbers<[1], [0], [0], [1], [0, 0, 1, 1], [], []>} : vector<32x128xf32>, vector<128x10xf32>, vector<32x10xf32> -> vector<32x10xf32>
    %c0_15 = arith.constant 0 : index
    %c0_16 = arith.constant 0 : index
    %18 = vector.load %arg7[%c0_15, %c0_16] : memref<1x10xf32, #tpu.memory_space<vmem>>, vector<1x10xf32>
    %19 = vector.broadcast %18 : vector<1x10xf32> to vector<32x10xf32>
    %20 = arith.addf %17, %19 : vector<32x10xf32>
    %cst_17 = arith.constant dense<0xFF800000> : vector<32xf32>
    %21 = vector.multi_reduction <maximumf>, %20, %cst_17 [1] : vector<32x10xf32> to vector<32xf32>
    %22 = vector.shape_cast %21 : vector<32xf32> to vector<32x1xf32>
    %23 = vector.broadcast %22 : vector<32x1xf32> to vector<32x10xf32>
    %24 = arith.subf %20, %23 : vector<32x10xf32>
    %25 = math.exp %24 : vector<32x10xf32>
    %cst_18 = arith.constant dense<0.000000e+00> : vector<32xf32>
    %26 = vector.multi_reduction <add>, %25, %cst_18 [1] : vector<32x10xf32> to vector<32xf32>
    %27 = vector.shape_cast %26 : vector<32xf32> to vector<32x1xf32>
    %28 = vector.broadcast %27 : vector<32x1xf32> to vector<32x10xf32>
    %29 = arith.divf %25, %28 : vector<32x10xf32>
    %30 = tpu.concatenate %29, %20 in 1 : vector<32x10xf32>, vector<32x10xf32> -> vector<32x20xf32>
    %c0_19 = arith.constant 0 : index
    %c0_20 = arith.constant 0 : index
    %31 = vector.load %arg8[%c0_19, %c0_20] : memref<32x20xf32, #tpu.memory_space<vmem>>, vector<32x20xf32>
    tpu.vector_store %arg8[%c0_19, %c0_20], %30 {strides = array<i32>} : memref<32x20xf32, #tpu.memory_space<vmem>>, vector<32x20xf32>,
    return
  }
  func.func @transform_0(%arg0: i32) -> (i32, i32) {
    %c0_i32 = arith.constant 0 : i32
    %c0_i32_0 = arith.constant 0 : i32
    return %arg0, %c0_i32 : i32, i32
  }
  func.func @transform_1(%arg0: i32) -> (i32, i32) {
    %c0_i32 = arith.constant 0 : i32
    %c0_i32_0 = arith.constant 0 : i32
    %c0_i32_1 = arith.constant 0 : i32
    return %c0_i32, %c0_i32_0 : i32, i32
  }
  func.func @transform_2(%arg0: i32) -> (i32, i32) {
    %c0_i32 = arith.constant 0 : i32
    %c0_i32_0 = arith.constant 0 : i32
    %c0_i32_1 = arith.constant 0 : i32
    return %c0_i32, %c0_i32_0 : i32, i32
  }
  func.func @transform_3(%arg0: i32) -> (i32, i32) {
    %c0_i32 = arith.constant 0 : i32
    %c0_i32_0 = arith.constant 0 : i32
    %c0_i32_1 = arith.constant 0 : i32
    return %c0_i32, %c0_i32_0 : i32, i32
  }
  func.func @transform_4(%arg0: i32) -> (i32, i32) {
    %c0_i32 = arith.constant 0 : i32
    %c0_i32_0 = arith.constant 0 : i32
    %c0_i32_1 = arith.constant 0 : i32
    return %c0_i32, %c0_i32_0 : i32, i32
  }
  func.func @transform_5(%arg0: i32) -> (i32, i32) {
    %c0_i32 = arith.constant 0 : i32
    %c0_i32_0 = arith.constant 0 : i32
    %c0_i32_1 = arith.constant 0 : i32
    return %c0_i32, %c0_i32_0 : i32, i32
  }
  func.func @transform_6(%arg0: i32) -> (i32, i32) {
    %c0_i32 = arith.constant 0 : i32
    %c0_i32_0 = arith.constant 0 : i32
    %c0_i32_1 = arith.constant 0 : i32
    return %c0_i32, %c0_i32_0 : i32, i32
  }
  func.func @transform_7(%arg0: i32) -> (i32, i32) {
    %c0_i32 = arith.constant 0 : i32
    %c0_i32_0 = arith.constant 0 : i32
    return %arg0, %c0_i32 : i32, i32
  }
}

</mosaic_0001>

<llo_original>
// kernel: tpu_custom_call.1
$region0: #{tpu_custom_call.1}
  #allocation0 [shape = 'u32[]', space=smem, size = 0x4, offset = 0x4, fixed_abs, tag = 'smem constant byte address 0x4 - core index']
  #allocation1 [shape = 'u32[144,128]{1,0:T(1,128)}', space=vmem, size = 0x12000, scoped, tag = 'internal scratch']
  %s0 = inlined_call_operand.hbm [shape: f32[20,2352], index: 0, kind: input, shape index: {}]
  %s1 = inlined_call_operand.hbm [shape: bf16[2352,128], index: 1, kind: input, shape index: {}]
  %s2 = inlined_call_operand.vmem [shape: f32[1,128], index: 2, kind: input, shape index: {}]
  %s3 = inlined_call_operand.vmem [shape: f32[128,128], index: 3, kind: input, shape index: {}]
  %s4 = inlined_call_operand.vmem [shape: f32[1,128], index: 4, kind: input, shape index: {}]
  %s5 = inlined_call_operand.vmem [shape: f32[128,10], index: 5, kind: input, shape index: {}]
  %s6 = inlined_call_operand.vmem [shape: f32[1,10], index: 6, kind: input, shape index: {}]
  %s7 = inlined_call_operand.hbm [shape: f32[20,20], index: 7, kind: output, shape index: {}]
  %s8 = sld [smem:[#allocation0]]
  $region46: #{tpu_custom_call.1} parent=0
    _
  %s10 = ssub.s32 1, %s8
  %s11 = scalar_select 0, %s10, %s8
  $region1: #{tpu_custom_call.1} parent=0
    #allocation2 [shape = 'u8[311296]{0}', space=vmem, size = 0x4c000, scoped, tag = 'input window, operand 0, single buffered']
    #allocation3 [shape = 's32[1]{0}', space=sflag, size = 0x4, scoped, tag = 'scoped memory for tpu_custom_call.1']
    #allocation4 [shape = 's32[1]{0}', space=sflag, size = 0x4, scoped, tag = 'scoped memory for tpu_custom_call.1']
    #allocation5 [shape = 'u8[602112]{0}', space=vmem, size = 0x93000, scoped, tag = 'input window, operand 1, single buffered']
    #allocation6 [shape = 's32[1]{0}', space=sflag, size = 0x4, scoped, tag = 'scoped memory for tpu_custom_call.1']
    #allocation7 [shape = 'u8[16384]{0}', space=vmem, size = 0x4000, scoped, tag = 'output window, operand 0, single buffered']
    %12 = vsyncpa [#allocation3], 0
    %13 = vsyncpa [#allocation6], 0
    %14 = vsyncpa [#allocation4], 0
    // Predicated region
    $region2: #{tpu_custom_call.1} parent=1 // pred_check
      _
    $region3: #{tpu_custom_call.1} parent=1 // pred_check_branch
      %16 = sbr.rel (0) target = $region5
    $region4: #{tpu_custom_call.1} parent=1 // pred_region
      %s18 = ssub.s32 9728, 7296
      %19 = vsyncadd [#allocation3], %s18
      %s20 = sshll.u32 [#allocation2], 4
      %s21 = int_to_ptr.vmem [resolvable:$true] %s20
      %26 = dma.hbm_to_vmem [thread:$0]  %s0, 7296, %s21, [#allocation3], 2432, 2432, 152
    $region5: #{tpu_custom_call.1} parent=1 // pred_fallthru
      _
    // Predicated region
    $region6: #{tpu_custom_call.1} parent=1 // pred_check
      _
    $region7: #{tpu_custom_call.1} parent=1 // pred_check_branch
      %28 = sbr.rel (0) target = $region9
    $region8: #{tpu_custom_call.1} parent=1 // pred_region
      %s30 = ssub.s32 18816, 18816
      %31 = vsyncadd [#allocation6], %s30
      %s32 = sshll.u32 [#allocation5], 4
      %s33 = int_to_ptr.vmem [resolvable:$true] %s32
      %38 = dma.hbm_to_vmem [thread:$0]  %s1, 18816, %s33, [#allocation6], 64, 64, 4
    $region9: #{tpu_custom_call.1} parent=1 // pred_fallthru
      _
    // Predicated region
    $region10: #{tpu_custom_call.1} parent=1 // pred_check
      _
    $region11: #{tpu_custom_call.1} parent=1 // pred_check_branch
      %40 = sbr.rel (0) target = $region13
    $region12: #{tpu_custom_call.1} parent=1 // pred_region
      _
    $region13: #{tpu_custom_call.1} parent=1 // pred_fallthru
      _
    // Predicated region
    $region14: #{tpu_custom_call.1} parent=1 // pred_check
      _
    $region15: #{tpu_custom_call.1} parent=1 // pred_check_branch
      %42 = sbr.rel (0) target = $region17
    $region16: #{tpu_custom_call.1} parent=1 // pred_region
      _
    $region17: #{tpu_custom_call.1} parent=1 // pred_fallthru
      _
    // Predicated region
    $region18: #{tpu_custom_call.1} parent=1 // pred_check
      _
    $region19: #{tpu_custom_call.1} parent=1 // pred_check_branch
      %44 = sbr.rel (0) target = $region21
    $region20: #{tpu_custom_call.1} parent=1 // pred_region
      _
    $region21: #{tpu_custom_call.1} parent=1 // pred_fallthru
      _
    // Predicated region
    $region22: #{tpu_custom_call.1} parent=1 // pred_check
      _
    $region23: #{tpu_custom_call.1} parent=1 // pred_check_branch
      %46 = sbr.rel (0) target = $region25
    $region24: #{tpu_custom_call.1} parent=1 // pred_region
      _
    $region25: #{tpu_custom_call.1} parent=1 // pred_fallthru
      _
    // Predicated region
    $region26: #{tpu_custom_call.1} parent=1 // pred_check
      _
    $region27: #{tpu_custom_call.1} parent=1 // pred_check_branch
      %48 = sbr.rel (0) target = $region29
    $region28: #{tpu_custom_call.1} parent=1 // pred_region
      _
    $region29: #{tpu_custom_call.1} parent=1 // pred_fallthru
      _
    // Predicated region
    $region30: #{tpu_custom_call.1} parent=1 // pred_check
      _
    $region31: #{tpu_custom_call.1} parent=1 // pred_check_branch
      %50 = sbr.rel (0) target = $region33
    $region32: #{tpu_custom_call.1} parent=1 // pred_region
      %51 = dma.done [#allocation3], 9728
    $region33: #{tpu_custom_call.1} parent=1 // pred_fallthru
      _
    // Predicated region
    $region34: #{tpu_custom_call.1} parent=1 // pred_check
      _
    $region35: #{tpu_custom_call.1} parent=1 // pred_check_branch
      %53 = sbr.rel (0) target = $region37
    $region36: #{tpu_custom_call.1} parent=1 // pred_region
      %54 = dma.done [#allocation6], 18816
    $region37: #{tpu_custom_call.1} parent=1 // pred_fallthru
      _
    %v56 = vld [vmem:[#allocation2] sm:$0xff]
    %v57 = vld [vmem:[#allocation2 + $0x8] sm:$0xff]
    %v58 = vld [vmem:[#allocation2 + $0x10] sm:$0xff]
    %v59 = vld [vmem:[#allocation2 + $0x18] sm:$0xff]
    %v60 = vld [vmem:[#allocation2 + $0x20] sm:$0xff]
    %v61 = vld [vmem:[#allocation2 + $0x28] sm:$0xff]
    %v62 = vld [vmem:[#allocation2 + $0x30] sm:$0xff]
    %v63 = vld [vmem:[#allocation2 + $0x38] sm:$0xff]
    %v64 = vld [vmem:[#allocation2 + $0x40] sm:$0xff]
    %v65 = vld [vmem:[#allocation2 + $0x48] sm:$0xff]
    %v66 = vld [vmem:[#allocation2 + $0x50] sm:$0xff]
    %v67 = vld [vmem:[#allocation2 + $0x58] sm:$0xff]
    %v68 = vld [vmem:[#allocation2 + $0x60] sm:$0xff]
    %v69 = vld [vmem:[#allocation2 + $0x68] sm:$0xff]
    %v70 = vld [vmem:[#allocation2 + $0x70] sm:$0xff]
    %v71 = vld [vmem:[#allocation2 + $0x78] sm:$0xff]
    %v72 = vld [vmem:[#allocation2 + $0x80] sm:$0xff]
    %v73 = vld [vmem:[#allocation2 + $0x88] sm:$0xff]
    %v74 = vld [vmem:[#allocation2 + $0x90] sm:$0xff]
    %v75 = vld [vmem:[#allocation2 + $0x98] sm:$0xff]
    %v76 = vld [vmem:[#allocation2 + $0xa0] sm:$0xff]
    %v77 = vld [vmem:[#allocation2 + $0xa8] sm:$0xff]
    %v78 = vld [vmem:[#allocation2 + $0xb0] sm:$0xff]
    %v79 = vld [vmem:[#allocation2 + $0xb8] sm:$0xff]
    %v80 = vld [vmem:[#allocation2 + $0xc0] sm:$0xff]
    %v81 = vld [vmem:[#allocation2 + $0xc8] sm:$0xff]
    %v82 = vld [vmem:[#allocation2 + $0xd0] sm:$0xff]
    %v83 = vld [vmem:[#allocation2 + $0xd8] sm:$0xff]
    %v84 = vld [vmem:[#allocation2 + $0xe0] sm:$0xff]
    %v85 = vld [vmem:[#allocation2 + $0xe8] sm:$0xff]
    %v86 = vld [vmem:[#allocation2 + $0xf0] sm:$0xff]
    %v87 = vld [vmem:[#allocation2 + $0xf8] sm:$0xff]
    %v88 = vld [vmem:[#allocation2 + $0x100] sm:$0xff]
    %v89 = vld [vmem:[#allocation2 + $0x108] sm:$0xff]
    %v90 = vld [vmem:[#allocation2 + $0x110] sm:$0xff]
    %v91 = vld [vmem:[#allocation2 + $0x118] sm:$0xff]
    %v92 = vld [vmem:[#allocation2 + $0x120] sm:$0xff]
    %v93 = vld [vmem:[#allocation2 + $0x128] sm:$0xff]
    %v94 = vld [vmem:[#allocation2 + $0x130] sm:$0xff]
    %v95 = vld [vmem:[#allocation2 + $0x138] sm:$0xff]
    %v96 = vld [vmem:[#allocation2 + $0x140] sm:$0xff]
    %v97 = vld [vmem:[#allocation2 + $0x148] sm:$0xff]
    %v98 = vld [vmem:[#allocation2 + $0x150] sm:$0xff]
    %v99 = vld [vmem:[#allocation2 + $0x158] sm:$0xff]
    %v100 = vld [vmem:[#allocation2 + $0x160] sm:$0xff]
    %v101 = vld [vmem:[#allocation2 + $0x168] sm:$0xff]
    %v102 = vld [vmem:[#allocation2 + $0x170] sm:$0xff]
    %v103 = vld [vmem:[#allocation2 + $0x178] sm:$0xff]
    %v104 = vld [vmem:[#allocation2 + $0x180] sm:$0xff]
    %v105 = vld [vmem:[#allocation2 + $0x188] sm:$0xff]
    %v106 = vld [vmem:[#allocation2 + $0x190] sm:$0xff]
    %v107 = vld [vmem:[#allocation2 + $0x198] sm:$0xff]
    %v108 = vld [vmem:[#allocation2 + $0x1a0] sm:$0xff]
    %v109 = vld [vmem:[#allocation2 + $0x1a8] sm:$0xff]
    %v110 = vld [vmem:[#allocation2 + $0x1b0] sm:$0xff]
    %v111 = vld [vmem:[#allocation2 + $0x1b8] sm:$0xff]
    %v112 = vld [vmem:[#allocation2 + $0x1c0] sm:$0xff]
    %v113 = vld [vmem:[#allocation2 + $0x1c8] sm:$0xff]
    %v114 = vld [vmem:[#allocation2 + $0x1d0] sm:$0xff]
    %v115 = vld [vmem:[#allocation2 + $0x1d8] sm:$0xff]
    %v116 = vld [vmem:[#allocation2 + $0x1e0] sm:$0xff]
    %v117 = vld [vmem:[#allocation2 + $0x1e8] sm:$0xff]
    %v118 = vld [vmem:[#allocation2 + $0x1f0] sm:$0xff]
    %v119 = vld [vmem:[#allocation2 + $0x1f8] sm:$0xff]
    %v120 = vld [vmem:[#allocation2 + $0x200] sm:$0xff]
    %v121 = vld [vmem:[#allocation2 + $0x208] sm:$0xff]
    %v122 = vld [vmem:[#allocation2 + $0x210] sm:$0xff]
    %v123 = vld [vmem:[#allocation2 + $0x218] sm:$0xff]
    %v124 = vld [vmem:[#allocation2 + $0x220] sm:$0xff]
    %v125 = vld [vmem:[#allocation2 + $0x228] sm:$0xff]
    %v126 = vld [vmem:[#allocation2 + $0x230] sm:$0xff]
    %v127 = vld [vmem:[#allocation2 + $0x238] sm:$0xff]
    %v128 = vld [vmem:[#allocation2 + $0x240] sm:$0xff]
    %v129 = vld [vmem:[#allocation2 + $0x248] sm:$0xff]
    %v130 = vld [vmem:[#allocation2 + $0x250] sm:$0xff]
    %v131 = vld [vmem:[#allocation2 + $0x258] sm:$0xff]
    %v132 = vpack.c.bf16 %v75, %v56
    %v133 = vpack.c.bf16 %v76, %v57
    %v134 = vpack.c.bf16 %v77, %v58
    %v135 = vpack.c.bf16 %v78, %v59
    %v136 = vpack.c.bf16 %v79, %v60
    %v137 = vpack.c.bf16 %v80, %v61
    %v138 = vpack.c.bf16 %v81, %v62
    %v139 = vpack.c.bf16 %v82, %v63
    %v140 = vpack.c.bf16 %v83, %v64
    %v141 = vpack.c.bf16 %v84, %v65
    %v142 = vpack.c.bf16 %v85, %v66
    %v143 = vpack.c.bf16 %v86, %v67
    %v144 = vpack.c.bf16 %v87, %v68
    %v145 = vpack.c.bf16 %v88, %v69
    %v146 = vpack.c.bf16 %v89, %v70
    %v147 = vpack.c.bf16 %v90, %v71
    %v148 = vpack.c.bf16 %v91, %v72
    %v149 = vpack.c.bf16 %v92, %v73
    %v150 = vpack.c.bf16 %v93, %v74
    %v151 = vpack.c.bf16 %v113, %v94
    %v152 = vpack.c.bf16 %v114, %v95
    %v153 = vpack.c.bf16 %v115, %v96
    %v154 = vpack.c.bf16 %v116, %v97
    %v155 = vpack.c.bf16 %v117, %v98
    %v156 = vpack.c.bf16 %v118, %v99
    %v157 = vpack.c.bf16 %v119, %v100
    %v158 = vpack.c.bf16 %v120, %v101
    %v159 = vpack.c.bf16 %v121, %v102
    %v160 = vpack.c.bf16 %v122, %v103
    %v161 = vpack.c.bf16 %v123, %v104
    %v162 = vpack.c.bf16 %v124, %v105
    %v163 = vpack.c.bf16 %v125, %v106
    %v164 = vpack.c.bf16 %v126, %v107
    %v165 = vpack.c.bf16 %v127, %v108
    %v166 = vpack.c.bf16 %v128, %v109
    %v167 = vpack.c.bf16 %v129, %v110
    %v168 = vpack.c.bf16 %v130, %v111
    %v169 = vpack.c.bf16 %v131, %v112
    %v170 = vld [vmem:[#allocation5] sm:$0xf]
    %v171 = vld [vmem:[#allocation5 + $0x4] sm:$0xf]
    %v172 = vld [vmem:[#allocation5 + $0x8] sm:$0xf]
    %v173 = vld [vmem:[#allocation5 + $0xc] sm:$0xf]
    %v174 = vld [vmem:[#allocation5 + $0x10] sm:$0xf]
    %v175 = vld [vmem:[#allocation5 + $0x14] sm:$0xf]
    %v176 = vld [vmem:[#allocation5 + $0x18] sm:$0xf]
    %v177 = vld [vmem:[#allocation5 + $0x1c] sm:$0xf]
    %v178 = vld [vmem:[#allocation5 + $0x20] sm:$0xf]
    %v179 = vld [vmem:[#allocation5 + $0x24] sm:$0xf]
    %v180 = vld [vmem:[#allocation5 + $0x28] sm:$0xf]
    %v181 = vld [vmem:[#allocation5 + $0x2c] sm:$0xf]
    %v182 = vld [vmem:[#allocation5 + $0x30] sm:$0xf]
    %v183 = vld [vmem:[#allocation5 + $0x34] sm:$0xf]
    %v184 = vld [vmem:[#allocation5 + $0x38] sm:$0xf]
    %v185 = vld [vmem:[#allocation5 + $0x3c] sm:$0xf]
    %v186 = vld [vmem:[#allocation5 + $0x40] sm:$0xf]
    %v187 = vld [vmem:[#allocation5 + $0x44] sm:$0xf]
    %v188 = vld [vmem:[#allocation5 + $0x48] sm:$0xf]
    %v189 = vld [vmem:[#allocation5 + $0x4c] sm:$0xf]
    %v190 = vld [vmem:[#allocation5 + $0x50] sm:$0xf]
    %v191 = vld [vmem:[#allocation5 + $0x54] sm:$0xf]
    %v192 = vld [vmem:[#allocation5 + $0x58] sm:$0xf]
    %v193 = vld [vmem:[#allocation5 + $0x5c] sm:$0xf]
    %v194 = vld [vmem:[#allocation5 + $0x60] sm:$0xf]
    %v195 = vld [vmem:[#allocation5 + $0x64] sm:$0xf]
    %v196 = vld [vmem:[#allocation5 + $0x68] sm:$0xf]
    %v197 = vld [vmem:[#allocation5 + $0x6c] sm:$0xf]
    %v198 = vld [vmem:[#allocation5 + $0x70] sm:$0xf]
    %v199 = vld [vmem:[#allocation5 + $0x74] sm:$0xf]
    %v200 = vld [vmem:[#allocation5 + $0x78] sm:$0xf]
    %v201 = vld [vmem:[#allocation5 + $0x7c] sm:$0xf]
    %v202 = vld [vmem:[#allocation5 + $0x80] sm:$0xf]
    %v203 = vld [vmem:[#allocation5 + $0x84] sm:$0xf]
    %v204 = vld [vmem:[#allocation5 + $0x88] sm:$0xf]
    %v205 = vld [vmem:[#allocation5 + $0x8c] sm:$0xf]
    %v206 = vld [vmem:[#allocation5 + $0x90] sm:$0xf]
    %v207 = vld [vmem:[#allocation5 + $0x94] sm:$0xf]
    %v208 = vld [vmem:[#allocation5 + $0x98] sm:$0xf]
    %v209 = vld [vmem:[#allocation5 + $0x9c] sm:$0xf]
    %v210 = vld [vmem:[#allocation5 + $0xa0] sm:$0xf]
    %v211 = vld [vmem:[#allocation5 + $0xa4] sm:$0xf]
    %v212 = vld [vmem:[#allocation5 + $0xa8] sm:$0xf]
    %v213 = vld [vmem:[#allocation5 + $0xac] sm:$0xf]
    %v214 = vld [vmem:[#allocation5 + $0xb0] sm:$0xf]
    %v215 = vld [vmem:[#allocation5 + $0xb4] sm:$0xf]
    %v216 = vld [vmem:[#allocation5 + $0xb8] sm:$0xf]
    %v217 = vld [vmem:[#allocation5 + $0xbc] sm:$0xf]
    %v218 = vld [vmem:[#allocation5 + $0xc0] sm:$0xf]
    %v219 = vld [vmem:[#allocation5 + $0xc4] sm:$0xf]
    %v220 = vld [vmem:[#allocation5 + $0xc8] sm:$0xf]
    %v221 = vld [vmem:[#allocation5 + $0xcc] sm:$0xf]
    %v222 = vld [vmem:[#allocation5 + $0xd0] sm:$0xf]
    %v223 = vld [vmem:[#allocation5 + $0xd4] sm:$0xf]
    %v224 = vld [vmem:[#allocation5 + $0xd8] sm:$0xf]
    %v225 = vld [vmem:[#allocation5 + $0xdc] sm:$0xf]
    %v226 = vld [vmem:[#allocation5 + $0xe0] sm:$0xf]
    %v227 = vld [vmem:[#allocation5 + $0xe4] sm:$0xf]
    %v228 = vld [vmem:[#allocation5 + $0xe8] sm:$0xf]
    %v229 = vld [vmem:[#allocation5 + $0xec] sm:$0xf]
    %v230 = vld [vmem:[#allocation5 + $0xf0] sm:$0xf]
    %v231 = vld [vmem:[#allocation5 + $0xf4] sm:$0xf]
    %v232 = vld [vmem:[#allocation5 + $0xf8] sm:$0xf]
    %v233 = vld [vmem:[#allocation5 + $0xfc] sm:$0xf]
    %v234 = vld [vmem:[#allocation5 + $0x100] sm:$0xf]
    %v235 = vld [vmem:[#allocation5 + $0x104] sm:$0xf]
    %v236 = vld [vmem:[#allocation5 + $0x108] sm:$0xf]
    %v237 = vld [vmem:[#allocation5 + $0x10c] sm:$0xf]
    %v238 = vld [vmem:[#allocation5 + $0x110] sm:$0xf]
    %v239 = vld [vmem:[#allocation5 + $0x114] sm:$0xf]
    %v240 = vld [vmem:[#allocation5 + $0x118] sm:$0xf]
    %v241 = vld [vmem:[#allocation5 + $0x11c] sm:$0xf]
    %v242 = vld [vmem:[#allocation5 + $0x120] sm:$0xf]
    %v243 = vld [vmem:[#allocation5 + $0x124] sm:$0xf]
    %v244 = vld [vmem:[#allocation5 + $0x128] sm:$0xf]
    %v245 = vld [vmem:[#allocation5 + $0x12c] sm:$0xf]
    %v246 = vld [vmem:[#allocation5 + $0x130] sm:$0xf]
    %v247 = vld [vmem:[#allocation5 + $0x134] sm:$0xf]
    %v248 = vld [vmem:[#allocation5 + $0x138] sm:$0xf]
    %v249 = vld [vmem:[#allocation5 + $0x13c] sm:$0xf]
    %v250 = vld [vmem:[#allocation5 + $0x140] sm:$0xf]
    %v251 = vld [vmem:[#allocation5 + $0x144] sm:$0xf]
    %v252 = vld [vmem:[#allocation5 + $0x148] sm:$0xf]
    %v253 = vld [vmem:[#allocation5 + $0x14c] sm:$0xf]
    %v254 = vld [vmem:[#allocation5 + $0x150] sm:$0xf]
    %v255 = vld [vmem:[#allocation5 + $0x154] sm:$0xf]
    %v256 = vld [vmem:[#allocation5 + $0x158] sm:$0xf]
    %v257 = vld [vmem:[#allocation5 + $0x15c] sm:$0xf]
    %v258 = vld [vmem:[#allocation5 + $0x160] sm:$0xf]
    %v259 = vld [vmem:[#allocation5 + $0x164] sm:$0xf]
    %v260 = vld [vmem:[#allocation5 + $0x168] sm:$0xf]
    %v261 = vld [vmem:[#allocation5 + $0x16c] sm:$0xf]
    %v262 = vld [vmem:[#allocation5 + $0x170] sm:$0xf]
    %v263 = vld [vmem:[#allocation5 + $0x174] sm:$0xf]
    %v264 = vld [vmem:[#allocation5 + $0x178] sm:$0xf]
    %v265 = vld [vmem:[#allocation5 + $0x17c] sm:$0xf]
    %v266 = vld [vmem:[#allocation5 + $0x180] sm:$0xf]
    %v267 = vld [vmem:[#allocation5 + $0x184] sm:$0xf]
    %v268 = vld [vmem:[#allocation5 + $0x188] sm:$0xf]
    %v269 = vld [vmem:[#allocation5 + $0x18c] sm:$0xf]
    %v270 = vld [vmem:[#allocation5 + $0x190] sm:$0xf]
    %v271 = vld [vmem:[#allocation5 + $0x194] sm:$0xf]
    %v272 = vld [vmem:[#allocation5 + $0x198] sm:$0xf]
    %v273 = vld [vmem:[#allocation5 + $0x19c] sm:$0xf]
    %v274 = vld [vmem:[#allocation5 + $0x1a0] sm:$0xf]
    %v275 = vld [vmem:[#allocation5 + $0x1a4] sm:$0xf]
    %v276 = vld [vmem:[#allocation5 + $0x1a8] sm:$0xf]
    %v277 = vld [vmem:[#allocation5 + $0x1ac] sm:$0xf]
    %v278 = vld [vmem:[#allocation5 + $0x1b0] sm:$0xf]
    %v279 = vld [vmem:[#allocation5 + $0x1b4] sm:$0xf]
    %v280 = vld [vmem:[#allocation5 + $0x1b8] sm:$0xf]
    %v281 = vld [vmem:[#allocation5 + $0x1bc] sm:$0xf]
    %v282 = vld [vmem:[#allocation5 + $0x1c0] sm:$0xf]
    %v283 = vld [vmem:[#allocation5 + $0x1c4] sm:$0xf]
    %v284 = vld [vmem:[#allocation5 + $0x1c8] sm:$0xf]
    %v285 = vld [vmem:[#allocation5 + $0x1cc] sm:$0xf]
    %v286 = vld [vmem:[#allocation5 + $0x1d0] sm:$0xf]
    %v287 = vld [vmem:[#allocation5 + $0x1d4] sm:$0xf]
    %v288 = vld [vmem:[#allocation5 + $0x1d8] sm:$0xf]
    %v289 = vld [vmem:[#allocation5 + $0x1dc] sm:$0xf]
    %v290 = vld [vmem:[#allocation5 + $0x1e0] sm:$0xf]
    %v291 = vld [vmem:[#allocation5 + $0x1e4] sm:$0xf]
    %v292 = vld [vmem:[#allocation5 + $0x1e8] sm:$0xf]
    %v293 = vld [vmem:[#allocation5 + $0x1ec] sm:$0xf]
    %v294 = vld [vmem:[#allocation5 + $0x1f0] sm:$0xf]
    %v295 = vld [vmem:[#allocation5 + $0x1f4] sm:$0xf]
    %v296 = vld [vmem:[#allocation5 + $0x1f8] sm:$0xf]
    %v297 = vld [vmem:[#allocation5 + $0x1fc] sm:$0xf]
    %v298 = vld [vmem:[#allocation5 + $0x200] sm:$0xf]
    %v299 = vld [vmem:[#allocation5 + $0x204] sm:$0xf]
    %v300 = vld [vmem:[#allocation5 + $0x208] sm:$0xf]
    %v301 = vld [vmem:[#allocation5 + $0x20c] sm:$0xf]
    %v302 = vld [vmem:[#allocation5 + $0x210] sm:$0xf]
    %v303 = vld [vmem:[#allocation5 + $0x214] sm:$0xf]
    %v304 = vld [vmem:[#allocation5 + $0x218] sm:$0xf]
    %v305 = vld [vmem:[#allocation5 + $0x21c] sm:$0xf]
    %v306 = vld [vmem:[#allocation5 + $0x220] sm:$0xf]
    %v307 = vld [vmem:[#allocation5 + $0x224] sm:$0xf]
    %v308 = vld [vmem:[#allocation5 + $0x228] sm:$0xf]
    %v309 = vld [vmem:[#allocation5 + $0x22c] sm:$0xf]
    %v310 = vld [vmem:[#allocation5 + $0x230] sm:$0xf]
    %v311 = vld [vmem:[#allocation5 + $0x234] sm:$0xf]
    %v312 = vld [vmem:[#allocation5 + $0x238] sm:$0xf]
    %v313 = vld [vmem:[#allocation5 + $0x23c] sm:$0xf]
    %v314 = vld [vmem:[#allocation5 + $0x240] sm:$0xf]
    %v315 = vld [vmem:[#allocation5 + $0x244] sm:$0xf]
    %v316 = vld [vmem:[#allocation5 + $0x248] sm:$0xf]
    %v317 = vld [vmem:[#allocation5 + $0x24c] sm:$0xf]
    %v318 = vld [vmem:[#allocation5 + $0x250] sm:$0xf]
    %v319 = vld [vmem:[#allocation5 + $0x254] sm:$0xf]
    %v320 = vld [vmem:[#allocation5 + $0x258] sm:$0xf]
    %v321 = vld [vmem:[#allocation5 + $0x25c] sm:$0xf]
    %v322 = vld [vmem:[#allocation5 + $0x260] sm:$0xf]
    %v323 = vld [vmem:[#allocation5 + $0x264] sm:$0xf]
    %v324 = vld [vmem:[#allocation5 + $0x268] sm:$0xf]
    %v325 = vld [vmem:[#allocation5 + $0x26c] sm:$0xf]
    %v326 = vld [vmem:[#allocation5 + $0x270] sm:$0xf]
    %v327 = vld [vmem:[#allocation5 + $0x274] sm:$0xf]
    %v328 = vld [vmem:[#allocation5 + $0x278] sm:$0xf]
    %v329 = vld [vmem:[#allocation5 + $0x27c] sm:$0xf]
    %v330 = vld [vmem:[#allocation5 + $0x280] sm:$0xf]
    %v331 = vld [vmem:[#allocation5 + $0x284] sm:$0xf]
    %v332 = vld [vmem:[#allocation5 + $0x288] sm:$0xf]
    %v333 = vld [vmem:[#allocation5 + $0x28c] sm:$0xf]
    %v334 = vld [vmem:[#allocation5 + $0x290] sm:$0xf]
    %v335 = vld [vmem:[#allocation5 + $0x294] sm:$0xf]
    %v336 = vld [vmem:[#allocation5 + $0x298] sm:$0xf]
    %v337 = vld [vmem:[#allocation5 + $0x29c] sm:$0xf]
    %v338 = vld [vmem:[#allocation5 + $0x2a0] sm:$0xf]
    %v339 = vld [vmem:[#allocation5 + $0x2a4] sm:$0xf]
    %v340 = vld [vmem:[#allocation5 + $0x2a8] sm:$0xf]
    %v341 = vld [vmem:[#allocation5 + $0x2ac] sm:$0xf]
    %v342 = vld [vmem:[#allocation5 + $0x2b0] sm:$0xf]
    %v343 = vld [vmem:[#allocation5 + $0x2b4] sm:$0xf]
    %v344 = vld [vmem:[#allocation5 + $0x2b8] sm:$0xf]
    %v345 = vld [vmem:[#allocation5 + $0x2bc] sm:$0xf]
    %v346 = vld [vmem:[#allocation5 + $0x2c0] sm:$0xf]
    %v347 = vld [vmem:[#allocation5 + $0x2c4] sm:$0xf]
    %v348 = vld [vmem:[#allocation5 + $0x2c8] sm:$0xf]
    %v349 = vld [vmem:[#allocation5 + $0x2cc] sm:$0xf]
    %v350 = vld [vmem:[#allocation5 + $0x2d0] sm:$0xf]
    %v351 = vld [vmem:[#allocation5 + $0x2d4] sm:$0xf]
    %v352 = vld [vmem:[#allocation5 + $0x2d8] sm:$0xf]
    %v353 = vld [vmem:[#allocation5 + $0x2dc] sm:$0xf]
    %v354 = vld [vmem:[#allocation5 + $0x2e0] sm:$0xf]
    %v355 = vld [vmem:[#allocation5 + $0x2e4] sm:$0xf]
    %v356 = vld [vmem:[#allocation5 + $0x2e8] sm:$0xf]
    %v357 = vld [vmem:[#allocation5 + $0x2ec] sm:$0xf]
    %v358 = vld [vmem:[#allocation5 + $0x2f0] sm:$0xf]
    %v359 = vld [vmem:[#allocation5 + $0x2f4] sm:$0xf]
    %v360 = vld [vmem:[#allocation5 + $0x2f8] sm:$0xf]
    %v361 = vld [vmem:[#allocation5 + $0x2fc] sm:$0xf]
    %v362 = vld [vmem:[#allocation5 + $0x300] sm:$0xf]
    %v363 = vld [vmem:[#allocation5 + $0x304] sm:$0xf]
    %v364 = vld [vmem:[#allocation5 + $0x308] sm:$0xf]
    %v365 = vld [vmem:[#allocation5 + $0x30c] sm:$0xf]
    %v366 = vld [vmem:[#allocation5 + $0x310] sm:$0xf]
    %v367 = vld [vmem:[#allocation5 + $0x314] sm:$0xf]
    %v368 = vld [vmem:[#allocation5 + $0x318] sm:$0xf]
    %v369 = vld [vmem:[#allocation5 + $0x31c] sm:$0xf]
    %v370 = vld [vmem:[#allocation5 + $0x320] sm:$0xf]
    %v371 = vld [vmem:[#allocation5 + $0x324] sm:$0xf]
    %v372 = vld [vmem:[#allocation5 + $0x328] sm:$0xf]
    %v373 = vld [vmem:[#allocation5 + $0x32c] sm:$0xf]
    %v374 = vld [vmem:[#allocation5 + $0x330] sm:$0xf]
    %v375 = vld [vmem:[#allocation5 + $0x334] sm:$0xf]
    %v376 = vld [vmem:[#allocation5 + $0x338] sm:$0xf]
    %v377 = vld [vmem:[#allocation5 + $0x33c] sm:$0xf]
    %v378 = vld [vmem:[#allocation5 + $0x340] sm:$0xf]
    %v379 = vld [vmem:[#allocation5 + $0x344] sm:$0xf]
    %v380 = vld [vmem:[#allocation5 + $0x348] sm:$0xf]
    %v381 = vld [vmem:[#allocation5 + $0x34c] sm:$0xf]
    %v382 = vld [vmem:[#allocation5 + $0x350] sm:$0xf]
    %v383 = vld [vmem:[#allocation5 + $0x354] sm:$0xf]
    %v384 = vld [vmem:[#allocation5 + $0x358] sm:$0xf]
    %v385 = vld [vmem:[#allocation5 + $0x35c] sm:$0xf]
    %v386 = vld [vmem:[#allocation5 + $0x360] sm:$0xf]
    %v387 = vld [vmem:[#allocation5 + $0x364] sm:$0xf]
    %v388 = vld [vmem:[#allocation5 + $0x368] sm:$0xf]
    %v389 = vld [vmem:[#allocation5 + $0x36c] sm:$0xf]
    %v390 = vld [vmem:[#allocation5 + $0x370] sm:$0xf]
    %v391 = vld [vmem:[#allocation5 + $0x374] sm:$0xf]
    %v392 = vld [vmem:[#allocation5 + $0x378] sm:$0xf]
    %v393 = vld [vmem:[#allocation5 + $0x37c] sm:$0xf]
    %v394 = vld [vmem:[#allocation5 + $0x380] sm:$0xf]
    %v395 = vld [vmem:[#allocation5 + $0x384] sm:$0xf]
    %v396 = vld [vmem:[#allocation5 + $0x388] sm:$0xf]
    %v397 = vld [vmem:[#allocation5 + $0x38c] sm:$0xf]
    %v398 = vld [vmem:[#allocation5 + $0x390] sm:$0xf]
    %v399 = vld [vmem:[#allocation5 + $0x394] sm:$0xf]
    %v400 = vld [vmem:[#allocation5 + $0x398] sm:$0xf]
    %v401 = vld [vmem:[#allocation5 + $0x39c] sm:$0xf]
    %v402 = vld [vmem:[#allocation5 + $0x3a0] sm:$0xf]
    %v403 = vld [vmem:[#allocation5 + $0x3a4] sm:$0xf]
    %v404 = vld [vmem:[#allocation5 + $0x3a8] sm:$0xf]
    %v405 = vld [vmem:[#allocation5 + $0x3ac] sm:$0xf]
    %v406 = vld [vmem:[#allocation5 + $0x3b0] sm:$0xf]
    %v407 = vld [vmem:[#allocation5 + $0x3b4] sm:$0xf]
    %v408 = vld [vmem:[#allocation5 + $0x3b8] sm:$0xf]
    %v409 = vld [vmem:[#allocation5 + $0x3bc] sm:$0xf]
    %v410 = vld [vmem:[#allocation5 + $0x3c0] sm:$0xf]
    %v411 = vld [vmem:[#allocation5 + $0x3c4] sm:$0xf]
    %v412 = vld [vmem:[#allocation5 + $0x3c8] sm:$0xf]
    %v413 = vld [vmem:[#allocation5 + $0x3cc] sm:$0xf]
    %v414 = vld [vmem:[#allocation5 + $0x3d0] sm:$0xf]
    %v415 = vld [vmem:[#allocation5 + $0x3d4] sm:$0xf]
    %v416 = vld [vmem:[#allocation5 + $0x3d8] sm:$0xf]
    %v417 = vld [vmem:[#allocation5 + $0x3dc] sm:$0xf]
    %v418 = vld [vmem:[#allocation5 + $0x3e0] sm:$0xf]
    %v419 = vld [vmem:[#allocation5 + $0x3e4] sm:$0xf]
    %v420 = vld [vmem:[#allocation5 + $0x3e8] sm:$0xf]
    %v421 = vld [vmem:[#allocation5 + $0x3ec] sm:$0xf]
    %v422 = vld [vmem:[#allocation5 + $0x3f0] sm:$0xf]
    %v423 = vld [vmem:[#allocation5 + $0x3f4] sm:$0xf]
    %v424 = vld [vmem:[#allocation5 + $0x3f8] sm:$0xf]
    %v425 = vld [vmem:[#allocation5 + $0x3fc] sm:$0xf]
    %v426 = vld [vmem:[#allocation5 + $0x400] sm:$0xf]
    %v427 = vld [vmem:[#allocation5 + $0x404] sm:$0xf]
    %v428 = vld [vmem:[#allocation5 + $0x408] sm:$0xf]
    %v429 = vld [vmem:[#allocation5 + $0x40c] sm:$0xf]
    %v430 = vld [vmem:[#allocation5 + $0x410] sm:$0xf]
    %v431 = vld [vmem:[#allocation5 + $0x414] sm:$0xf]
    %v432 = vld [vmem:[#allocation5 + $0x418] sm:$0xf]
    %v433 = vld [vmem:[#allocation5 + $0x41c] sm:$0xf]
    %v434 = vld [vmem:[#allocation5 + $0x420] sm:$0xf]
    %v435 = vld [vmem:[#allocation5 + $0x424] sm:$0xf]
    %v436 = vld [vmem:[#allocation5 + $0x428] sm:$0xf]
    %v437 = vld [vmem:[#allocation5 + $0x42c] sm:$0xf]
    %v438 = vld [vmem:[#allocation5 + $0x430] sm:$0xf]
    %v439 = vld [vmem:[#allocation5 + $0x434] sm:$0xf]
    %v440 = vld [vmem:[#allocation5 + $0x438] sm:$0xf]
    %v441 = vld [vmem:[#allocation5 + $0x43c] sm:$0xf]
    %v442 = vld [vmem:[#allocation5 + $0x440] sm:$0xf]
    %v443 = vld [vmem:[#allocation5 + $0x444] sm:$0xf]
    %v444 = vld [vmem:[#allocation5 + $0x448] sm:$0xf]
    %v445 = vld [vmem:[#allocation5 + $0x44c] sm:$0xf]
    %v446 = vld [vmem:[#allocation5 + $0x450] sm:$0xf]
    %v447 = vld [vmem:[#allocation5 + $0x454] sm:$0xf]
    %v448 = vld [vmem:[#allocation5 + $0x458] sm:$0xf]
    %v449 = vld [vmem:[#allocation5 + $0x45c] sm:$0xf]
    %v450 = vld [vmem:[#allocation5 + $0x460] sm:$0xf]
    %v451 = vld [vmem:[#allocation5 + $0x464] sm:$0xf]
    %v452 = vld [vmem:[#allocation5 + $0x468] sm:$0xf]
    %v453 = vld [vmem:[#allocation5 + $0x46c] sm:$0xf]
    %v454 = vld [vmem:[#allocation5 + $0x470] sm:$0xf]
    %v455 = vld [vmem:[#allocation5 + $0x474] sm:$0xf]
    %v456 = vld [vmem:[#allocation5 + $0x478] sm:$0xf]
    %v457 = vld [vmem:[#allocation5 + $0x47c] sm:$0xf]
    %v458 = vld [vmem:[#allocation5 + $0x480] sm:$0xf]
    %v459 = vld [vmem:[#allocation5 + $0x484] sm:$0xf]
    %v460 = vld [vmem:[#allocation5 + $0x488] sm:$0xf]
    %v461 = vld [vmem:[#allocation5 + $0x48c] sm:$0xf]
    %v462 = vld [vmem:[#allocation5 + $0x490] sm:$0xf]
    %v463 = vld [vmem:[#allocation5 + $0x494] sm:$0xf]
    %v464 = vld [vmem:[%s2] sm:$0x1]
    %v466 = vlaneseq
    %v467 = vshrl.u32 %v466, 7
    %v468 = vsub.s32 0, %v467
    %v469 = vrot.slane %v464, %v468
    %v765 = vunpack.c.l.b16 %v170
    %v766 = vunpack.c.l.b16 %v171
    %v767 = vunpack.c.l.b16 %v172
    %v768 = vunpack.c.l.b16 %v173
    %v769 = vunpack.c.l.b16 %v174
    %v770 = vunpack.c.l.b16 %v175
    %v771 = vunpack.c.l.b16 %v176
    %v772 = vunpack.c.l.b16 %v177
    %v773 = vunpack.c.l.b16 %v178
    %v774 = vunpack.c.l.b16 %v179
    %v775 = vunpack.c.l.b16 %v180
    %v776 = vunpack.c.l.b16 %v181
    %v777 = vunpack.c.l.b16 %v182
    %v778 = vunpack.c.l.b16 %v183
    %v779 = vunpack.c.l.b16 %v184
    %v780 = vunpack.c.l.b16 %v185
    %v781 = vunpack.c.l.b16 %v186
    %v782 = vunpack.c.l.b16 %v187
    %v783 = vunpack.c.l.b16 %v188
    %v784 = vunpack.c.l.b16 %v189
    %v785 = vunpack.c.l.b16 %v190
    %v786 = vunpack.c.l.b16 %v191
    %v787 = vunpack.c.l.b16 %v192
    %v788 = vunpack.c.l.b16 %v193
    %v789 = vunpack.c.l.b16 %v194
    %v790 = vunpack.c.l.b16 %v195
    %v791 = vunpack.c.l.b16 %v196
    %v792 = vunpack.c.l.b16 %v197
    %v793 = vunpack.c.l.b16 %v198
    %v794 = vunpack.c.l.b16 %v199
    %v795 = vunpack.c.l.b16 %v200
    %v796 = vunpack.c.l.b16 %v201
    %v797 = vunpack.c.l.b16 %v202
    %v798 = vunpack.c.l.b16 %v203
    %v799 = vunpack.c.l.b16 %v204
    %v800 = vunpack.c.l.b16 %v205
    %v801 = vunpack.c.l.b16 %v206
    %v802 = vunpack.c.l.b16 %v207
    %v803 = vunpack.c.l.b16 %v208
    %v804 = vunpack.c.l.b16 %v209
    %v805 = vunpack.c.l.b16 %v210
    %v806 = vunpack.c.l.b16 %v211
    %v807 = vunpack.c.l.b16 %v212
    %v808 = vunpack.c.l.b16 %v213
    %v809 = vunpack.c.l.b16 %v214
    %v810 = vunpack.c.l.b16 %v215
    %v811 = vunpack.c.l.b16 %v216
    %v812 = vunpack.c.l.b16 %v217
    %v813 = vunpack.c.l.b16 %v218
    %v814 = vunpack.c.l.b16 %v219
    %v815 = vunpack.c.l.b16 %v220
    %v816 = vunpack.c.l.b16 %v221
    %v817 = vunpack.c.l.b16 %v222
    %v818 = vunpack.c.l.b16 %v223
    %v819 = vunpack.c.l.b16 %v224
    %v820 = vunpack.c.l.b16 %v225
    %v821 = vunpack.c.l.b16 %v226
    %v822 = vunpack.c.l.b16 %v227
    %v823 = vunpack.c.l.b16 %v228
    %v824 = vunpack.c.l.b16 %v229
    %v825 = vunpack.c.l.b16 %v230
    %v826 = vunpack.c.l.b16 %v231
    %v827 = vunpack.c.l.b16 %v232
    %v828 = vunpack.c.l.b16 %v233
    %v829 = vunpack.c.l.b16 %v234
    %v830 = vunpack.c.l.b16 %v235
    %v831 = vunpack.c.l.b16 %v236
    %v832 = vunpack.c.l.b16 %v237
    %v833 = vunpack.c.l.b16 %v238
    %v834 = vunpack.c.l.b16 %v239
    %v835 = vunpack.c.l.b16 %v240
    %v836 = vunpack.c.l.b16 %v241
    %v837 = vunpack.c.l.b16 %v242
    %v838 = vunpack.c.l.b16 %v243
    %v839 = vunpack.c.l.b16 %v244
    %v840 = vunpack.c.l.b16 %v245
    %v841 = vunpack.c.l.b16 %v246
    %v842 = vunpack.c.l.b16 %v247
    %v843 = vunpack.c.l.b16 %v248
    %v844 = vunpack.c.l.b16 %v249
    %v845 = vunpack.c.l.b16 %v250
    %v846 = vunpack.c.l.b16 %v251
    %v847 = vunpack.c.l.b16 %v252
    %v848 = vunpack.c.l.b16 %v253
    %v849 = vunpack.c.l.b16 %v254
    %v850 = vunpack.c.l.b16 %v255
    %v851 = vunpack.c.l.b16 %v256
    %v852 = vunpack.c.l.b16 %v257
    %v853 = vunpack.c.l.b16 %v258
    %v854 = vunpack.c.l.b16 %v259
    %v855 = vunpack.c.l.b16 %v260
    %v856 = vunpack.c.l.b16 %v261
    %v857 = vunpack.c.l.b16 %v262
    %v858 = vunpack.c.l.b16 %v263
    %v859 = vunpack.c.l.b16 %v264
    %v860 = vunpack.c.l.b16 %v265
    %v861 = vunpack.c.l.b16 %v266
    %v862 = vunpack.c.l.b16 %v267
    %v863 = vunpack.c.l.b16 %v268
    %v864 = vunpack.c.l.b16 %v269
    %v865 = vunpack.c.l.b16 %v270
    %v866 = vunpack.c.l.b16 %v271
    %v867 = vunpack.c.l.b16 %v272
    %v868 = vunpack.c.l.b16 %v273
    %v869 = vunpack.c.l.b16 %v274
    %v870 = vunpack.c.l.b16 %v275
    %v871 = vunpack.c.l.b16 %v276
    %v872 = vunpack.c.l.b16 %v277
    %v873 = vunpack.c.l.b16 %v278
    %v874 = vunpack.c.l.b16 %v279
    %v875 = vunpack.c.l.b16 %v280
    %v876 = vunpack.c.l.b16 %v281
    %v877 = vunpack.c.l.b16 %v282
    %v878 = vunpack.c.l.b16 %v283
    %v879 = vunpack.c.l.b16 %v284
    %v880 = vunpack.c.l.b16 %v285
    %v881 = vunpack.c.l.b16 %v286
    %v882 = vunpack.c.l.b16 %v287
    %v883 = vunpack.c.l.b16 %v288
    %v884 = vunpack.c.l.b16 %v289
    %v885 = vunpack.c.l.b16 %v290
    %v886 = vunpack.c.l.b16 %v291
    %v887 = vunpack.c.l.b16 %v292
    %v888 = vunpack.c.l.b16 %v293
    %v889 = vunpack.c.l.b16 %v294
    %v890 = vunpack.c.l.b16 %v295
    %v891 = vunpack.c.l.b16 %v296
    %v892 = vunpack.c.l.b16 %v297
    %v893 = vunpack.c.l.b16 %v298
    %v894 = vunpack.c.l.b16 %v299
    %v895 = vunpack.c.l.b16 %v300
    %v896 = vunpack.c.l.b16 %v301
    %v897 = vunpack.c.l.b16 %v302
    %v898 = vunpack.c.l.b16 %v303
    %v899 = vunpack.c.l.b16 %v304
    %v900 = vunpack.c.l.b16 %v305
    %v901 = vunpack.c.l.b16 %v306
    %v902 = vunpack.c.l.b16 %v307
    %v903 = vunpack.c.l.b16 %v308
    %v904 = vunpack.c.l.b16 %v309
    %v905 = vunpack.c.l.b16 %v310
    %v906 = vunpack.c.l.b16 %v311
    %v907 = vunpack.c.l.b16 %v312
    %v908 = vunpack.c.l.b16 %v313
    %v909 = vunpack.c.l.b16 %v314
    %v910 = vunpack.c.l.b16 %v315
    %v911 = vunpack.c.l.b16 %v316
    %v912 = vunpack.c.l.b16 %v317
    %v913 = vunpack.c.l.b16 %v318
    %v914 = vunpack.c.l.b16 %v319
    %v915 = vunpack.c.l.b16 %v320
    %v916 = vunpack.c.l.b16 %v321
    %v917 = vunpack.c.l.b16 %v322
    %v918 = vunpack.c.l.b16 %v323
    %v919 = vunpack.c.l.b16 %v324
    %v920 = vunpack.c.l.b16 %v325
    %v921 = vunpack.c.l.b16 %v326
    %v922 = vunpack.c.l.b16 %v327
    %v923 = vunpack.c.l.b16 %v328
    %v924 = vunpack.c.l.b16 %v329
    %v925 = vunpack.c.l.b16 %v330
    %v926 = vunpack.c.l.b16 %v331
    %v927 = vunpack.c.l.b16 %v332
    %v928 = vunpack.c.l.b16 %v333
    %v929 = vunpack.c.l.b16 %v334
    %v930 = vunpack.c.l.b16 %v335
    %v931 = vunpack.c.l.b16 %v336
    %v932 = vunpack.c.l.b16 %v337
    %v933 = vunpack.c.l.b16 %v338
    %v934 = vunpack.c.l.b16 %v339
    %v935 = vunpack.c.l.b16 %v340
    %v936 = vunpack.c.l.b16 %v341
    %v937 = vunpack.c.l.b16 %v342
    %v938 = vunpack.c.l.b16 %v343
    %v939 = vunpack.c.l.b16 %v344
    %v940 = vunpack.c.l.b16 %v345
    %v941 = vunpack.c.l.b16 %v346
    %v942 = vunpack.c.l.b16 %v347
    %v943 = vunpack.c.l.b16 %v348
    %v944 = vunpack.c.l.b16 %v349
    %v945 = vunpack.c.l.b16 %v350
    %v946 = vunpack.c.l.b16 %v351
    %v947 = vunpack.c.l.b16 %v352
    %v948 = vunpack.c.l.b16 %v353
    %v949 = vunpack.c.l.b16 %v354
    %v950 = vunpack.c.l.b16 %v355
    %v951 = vunpack.c.l.b16 %v356
    %v952 = vunpack.c.l.b16 %v357
    %v953 = vunpack.c.l.b16 %v358
    %v954 = vunpack.c.l.b16 %v359
    %v955 = vunpack.c.l.b16 %v360
    %v956 = vunpack.c.l.b16 %v361
    %v957 = vunpack.c.l.b16 %v362
    %v958 = vunpack.c.l.b16 %v363
    %v959 = vunpack.c.l.b16 %v364
    %v960 = vunpack.c.l.b16 %v365
    %v961 = vunpack.c.l.b16 %v366
    %v962 = vunpack.c.l.b16 %v367
    %v963 = vunpack.c.l.b16 %v368
    %v964 = vunpack.c.l.b16 %v369
    %v965 = vunpack.c.l.b16 %v370
    %v966 = vunpack.c.l.b16 %v371
    %v967 = vunpack.c.l.b16 %v372
    %v968 = vunpack.c.l.b16 %v373
    %v969 = vunpack.c.l.b16 %v374
    %v970 = vunpack.c.l.b16 %v375
    %v971 = vunpack.c.l.b16 %v376
    %v972 = vunpack.c.l.b16 %v377
    %v973 = vunpack.c.l.b16 %v378
    %v974 = vunpack.c.l.b16 %v379
    %v975 = vunpack.c.l.b16 %v380
    %v976 = vunpack.c.l.b16 %v381
    %v977 = vunpack.c.l.b16 %v382
    %v978 = vunpack.c.l.b16 %v383
    %v979 = vunpack.c.l.b16 %v384
    %v980 = vunpack.c.l.b16 %v385
    %v981 = vunpack.c.l.b16 %v386
    %v982 = vunpack.c.l.b16 %v387
    %v983 = vunpack.c.l.b16 %v388
    %v984 = vunpack.c.l.b16 %v389
    %v985 = vunpack.c.l.b16 %v390
    %v986 = vunpack.c.l.b16 %v391
    %v987 = vunpack.c.l.b16 %v392
    %v988 = vunpack.c.l.b16 %v393
    %v989 = vunpack.c.l.b16 %v394
    %v990 = vunpack.c.l.b16 %v395
    %v991 = vunpack.c.l.b16 %v396
    %v992 = vunpack.c.l.b16 %v397
    %v993 = vunpack.c.l.b16 %v398
    %v994 = vunpack.c.l.b16 %v399
    %v995 = vunpack.c.l.b16 %v400
    %v996 = vunpack.c.l.b16 %v401
    %v997 = vunpack.c.l.b16 %v402
    %v998 = vunpack.c.l.b16 %v403
    %v999 = vunpack.c.l.b16 %v404
    %v1000 = vunpack.c.l.b16 %v405
    %v1001 = vunpack.c.l.b16 %v406
    %v1002 = vunpack.c.l.b16 %v407
    %v1003 = vunpack.c.l.b16 %v408
    %v1004 = vunpack.c.l.b16 %v409
    %v1005 = vunpack.c.l.b16 %v410
    %v1006 = vunpack.c.l.b16 %v411
    %v1007 = vunpack.c.l.b16 %v412
    %v1008 = vunpack.c.l.b16 %v413
    %v1009 = vunpack.c.l.b16 %v414
    %v1010 = vunpack.c.l.b16 %v415
    %v1011 = vunpack.c.l.b16 %v416
    %v1012 = vunpack.c.l.b16 %v417
    %v1013 = vunpack.c.l.b16 %v418
    %v1014 = vunpack.c.l.b16 %v419
    %v1015 = vunpack.c.l.b16 %v420
    %v1016 = vunpack.c.l.b16 %v421
    %v1017 = vunpack.c.l.b16 %v422
    %v1018 = vunpack.c.l.b16 %v423
    %v1019 = vunpack.c.l.b16 %v424
    %v1020 = vunpack.c.l.b16 %v425
    %v1021 = vunpack.c.l.b16 %v426
    %v1022 = vunpack.c.l.b16 %v427
    %v1023 = vunpack.c.l.b16 %v428
    %v1024 = vunpack.c.l.b16 %v429
    %v1025 = vunpack.c.l.b16 %v430
    %v1026 = vunpack.c.l.b16 %v431
    %v1027 = vunpack.c.l.b16 %v432
    %v1028 = vunpack.c.l.b16 %v433
    %v1029 = vunpack.c.l.b16 %v434
    %v1030 = vunpack.c.l.b16 %v435
    %v1031 = vunpack.c.l.b16 %v436
    %v1032 = vunpack.c.l.b16 %v437
    %v1033 = vunpack.c.l.b16 %v438
    %v1034 = vunpack.c.l.b16 %v439
    %v1035 = vunpack.c.l.b16 %v440
    %v1036 = vunpack.c.l.b16 %v441
    %v1037 = vunpack.c.l.b16 %v442
    %v1038 = vunpack.c.l.b16 %v443
    %v1039 = vunpack.c.l.b16 %v444
    %v1040 = vunpack.c.l.b16 %v445
    %v1041 = vunpack.c.l.b16 %v446
    %v1042 = vunpack.c.l.b16 %v447
    %v1043 = vunpack.c.l.b16 %v448
    %v1044 = vunpack.c.l.b16 %v449
    %v1045 = vunpack.c.l.b16 %v450
    %v1046 = vunpack.c.l.b16 %v451
    %v1047 = vunpack.c.l.b16 %v452
    %v1048 = vunpack.c.l.b16 %v453
    %v1049 = vunpack.c.l.b16 %v454
    %v1050 = vunpack.c.l.b16 %v455
    %v1051 = vunpack.c.l.b16 %v456
    %v1052 = vunpack.c.l.b16 %v457
    %v1053 = vunpack.c.l.b16 %v458
    %v1054 = vunpack.c.l.b16 %v459
    %v1055 = vunpack.c.l.b16 %v460
    %v1056 = vunpack.c.l.b16 %v461
    %v1057 = vunpack.c.l.b16 %v462
    %v1058 = vunpack.c.l.b16 %v463
    %v1059 = vpack.c.b16 %v766, %v765
    %v1060 = vpack.c.b16 %v768, %v767
    %v1061 = vpack.c.b16 %v770, %v769
    %v1062 = vpack.c.b16 %v772, %v771
    %v1063 = vpack.c.b16 %v774, %v773
    %v1064 = vpack.c.b16 %v776, %v775
    %v1065 = vpack.c.b16 %v778, %v777
    %v1066 = vpack.c.b16 %v780, %v779
    %v1067 = vpack.c.b16 %v782, %v781
    %v1068 = vpack.c.b16 %v784, %v783
    %v1069 = vpack.c.b16 %v786, %v785
    %v1070 = vpack.c.b16 %v788, %v787
    %v1071 = vpack.c.b16 %v790, %v789
    %v1072 = vpack.c.b16 %v792, %v791
    %v1073 = vpack.c.b16 %v794, %v793
    %v1074 = vpack.c.b16 %v796, %v795
    %v1075 = vpack.c.b16 %v798, %v797
    %v1076 = vpack.c.b16 %v800, %v799
    %v1077 = vpack.c.b16 %v802, %v801
    %v1078 = vpack.c.b16 %v804, %v803
    %v1079 = vpack.c.b16 %v806, %v805
    %v1080 = vpack.c.b16 %v808, %v807
    %v1081 = vpack.c.b16 %v810, %v809
    %v1082 = vpack.c.b16 %v812, %v811
    %v1083 = vpack.c.b16 %v814, %v813
    %v1084 = vpack.c.b16 %v816, %v815
    %v1085 = vpack.c.b16 %v818, %v817
    %v1086 = vpack.c.b16 %v820, %v819
    %v1087 = vpack.c.b16 %v822, %v821
    %v1088 = vpack.c.b16 %v824, %v823
    %v1089 = vpack.c.b16 %v826, %v825
    %v1090 = vpack.c.b16 %v828, %v827
    %v1091 = vpack.c.b16 %v830, %v829
    %v1092 = vpack.c.b16 %v832, %v831
    %v1093 = vpack.c.b16 %v834, %v833
    %v1094 = vpack.c.b16 %v836, %v835
    %v1095 = vpack.c.b16 %v838, %v837
    %v1096 = vpack.c.b16 %v840, %v839
    %v1097 = vpack.c.b16 %v842, %v841
    %v1098 = vpack.c.b16 %v844, %v843
    %v1099 = vpack.c.b16 %v846, %v845
    %v1100 = vpack.c.b16 %v848, %v847
    %v1101 = vpack.c.b16 %v850, %v849
    %v1102 = vpack.c.b16 %v852, %v851
    %v1103 = vpack.c.b16 %v854, %v853
    %v1104 = vpack.c.b16 %v856, %v855
    %v1105 = vpack.c.b16 %v858, %v857
    %v1106 = vpack.c.b16 %v860, %v859
    %v1107 = vpack.c.b16 %v862, %v861
    %v1108 = vpack.c.b16 %v864, %v863
    %v1109 = vpack.c.b16 %v866, %v865
    %v1110 = vpack.c.b16 %v868, %v867
    %v1111 = vpack.c.b16 %v870, %v869
    %v1112 = vpack.c.b16 %v872, %v871
    %v1113 = vpack.c.b16 %v874, %v873
    %v1114 = vpack.c.b16 %v876, %v875
    %v1115 = vpack.c.b16 %v878, %v877
    %v1116 = vpack.c.b16 %v880, %v879
    %v1117 = vpack.c.b16 %v882, %v881
    %v1118 = vpack.c.b16 %v884, %v883
    %v1119 = vpack.c.b16 %v886, %v885
    %v1120 = vpack.c.b16 %v888, %v887
    %v1121 = vpack.c.b16 %v890, %v889
    %v1122 = vpack.c.b16 %v892, %v891
    %v1123 = vpack.c.b16 %v894, %v893
    %v1124 = vpack.c.b16 %v896, %v895
    %v1125 = vpack.c.b16 %v898, %v897
    %v1126 = vpack.c.b16 %v900, %v899
    %v1127 = vpack.c.b16 %v902, %v901
    %v1128 = vpack.c.b16 %v904, %v903
    %v1129 = vpack.c.b16 %v906, %v905
    %v1130 = vpack.c.b16 %v908, %v907
    %v1131 = vpack.c.b16 %v910, %v909
    %v1132 = vpack.c.b16 %v912, %v911
    %v1133 = vpack.c.b16 %v914, %v913
    %v1134 = vpack.c.b16 %v916, %v915
    %v1135 = vpack.c.b16 %v918, %v917
    %v1136 = vpack.c.b16 %v920, %v919
    %v1137 = vpack.c.b16 %v922, %v921
    %v1138 = vpack.c.b16 %v924, %v923
    %v1139 = vpack.c.b16 %v926, %v925
    %v1140 = vpack.c.b16 %v928, %v927
    %v1141 = vpack.c.b16 %v930, %v929
    %v1142 = vpack.c.b16 %v932, %v931
    %v1143 = vpack.c.b16 %v934, %v933
    %v1144 = vpack.c.b16 %v936, %v935
    %v1145 = vpack.c.b16 %v938, %v937
    %v1146 = vpack.c.b16 %v940, %v939
    %v1147 = vpack.c.b16 %v942, %v941
    %v1148 = vpack.c.b16 %v944, %v943
    %v1149 = vpack.c.b16 %v946, %v945
    %v1150 = vpack.c.b16 %v948, %v947
    %v1151 = vpack.c.b16 %v950, %v949
    %v1152 = vpack.c.b16 %v952, %v951
    %v1153 = vpack.c.b16 %v954, %v953
    %v1154 = vpack.c.b16 %v956, %v955
    %v1155 = vpack.c.b16 %v958, %v957
    %v1156 = vpack.c.b16 %v960, %v959
    %v1157 = vpack.c.b16 %v962, %v961
    %v1158 = vpack.c.b16 %v964, %v963
    %v1159 = vpack.c.b16 %v966, %v965
    %v1160 = vpack.c.b16 %v968, %v967
    %v1161 = vpack.c.b16 %v970, %v969
    %v1162 = vpack.c.b16 %v972, %v971
    %v1163 = vpack.c.b16 %v974, %v973
    %v1164 = vpack.c.b16 %v976, %v975
    %v1165 = vpack.c.b16 %v978, %v977
    %v1166 = vpack.c.b16 %v980, %v979
    %v1167 = vpack.c.b16 %v982, %v981
    %v1168 = vpack.c.b16 %v984, %v983
    %v1169 = vpack.c.b16 %v986, %v985
    %v1170 = vpack.c.b16 %v988, %v987
    %v1171 = vpack.c.b16 %v990, %v989
    %v1172 = vpack.c.b16 %v992, %v991
    %v1173 = vpack.c.b16 %v994, %v993
    %v1174 = vpack.c.b16 %v996, %v995
    %v1175 = vpack.c.b16 %v998, %v997
    %v1176 = vpack.c.b16 %v1000, %v999
    %v1177 = vpack.c.b16 %v1002, %v1001
    %v1178 = vpack.c.b16 %v1004, %v1003
    %v1179 = vpack.c.b16 %v1006, %v1005
    %v1180 = vpack.c.b16 %v1008, %v1007
    %v1181 = vpack.c.b16 %v1010, %v1009
    %v1182 = vpack.c.b16 %v1012, %v1011
    %v1183 = vpack.c.b16 %v1014, %v1013
    %v1184 = vpack.c.b16 %v1016, %v1015
    %v1185 = vpack.c.b16 %v1018, %v1017
    %v1186 = vpack.c.b16 %v1020, %v1019
    %v1187 = vpack.c.b16 %v1022, %v1021
    %v1188 = vpack.c.b16 %v1024, %v1023
    %v1189 = vpack.c.b16 %v1026, %v1025
    %v1190 = vpack.c.b16 %v1028, %v1027
    %v1191 = vpack.c.b16 %v1030, %v1029
    %v1192 = vpack.c.b16 %v1032, %v1031
    %v1193 = vpack.c.b16 %v1034, %v1033
    %v1194 = vpack.c.b16 %v1036, %v1035
    %v1195 = vpack.c.b16 %v1038, %v1037
    %v1196 = vpack.c.b16 %v1040, %v1039
    %v1197 = vpack.c.b16 %v1042, %v1041
    %v1198 = vpack.c.b16 %v1044, %v1043
    %v1199 = vpack.c.b16 %v1046, %v1045
    %v1200 = vpack.c.b16 %v1048, %v1047
    %v1201 = vpack.c.b16 %v1050, %v1049
    %v1202 = vpack.c.b16 %v1052, %v1051
    %v1203 = vpack.c.b16 %v1054, %v1053
    %v1204 = vpack.c.b16 %v1056, %v1055
    %v1205 = vpack.c.b16 %v1058, %v1057
    %vm1353 = vcmask 392192
    %v1355 = vsel %vm1353, %v150, 0
    %v1358 = vsel %vm1353, %v169, 0
    %1360 = vmatprep.subr.bf16.mxu0 0
    %1361 = vmatpush1.bf16.msra.mxu0 %v1066
    %1362 = vmatprep.subr.bf16.mxu0 0
    %1363 = vmatpush1.bf16.msra.mxu0 %v1065
    %1364 = vmatprep.subr.bf16.mxu0 0
    %1365 = vmatpush1.bf16.msra.mxu0 %v1064
    %1366 = vmatprep.subr.bf16.mxu0 0
    %1367 = vmatpush1.bf16.msra.mxu0 %v1063
    %1368 = vmatprep.subr.bf16.mxu0 0
    %1369 = vmatpush1.bf16.msra.mxu0 %v1062
    %1370 = vmatprep.subr.bf16.mxu0 0
    %1371 = vmatpush1.bf16.msra.mxu0 %v1061
    %1372 = vmatprep.subr.bf16.mxu0 0
    %1373 = vmatpush1.bf16.msra.mxu0 %v1060
    %1374 = vmatprep.subr.bf16.mxu0 0
    %1375 = vmatpush1.bf16.msra.mxu0 %v1059
    %1376 = vmatprep.subr.bf16.mxu0 0
    %1377 = vmatpush2.bf16.msra.mxu0 %v1074
    %1378 = vmatprep.subr.bf16.mxu0 0
    %1379 = vmatpush2.bf16.msra.mxu0 %v1073
    %1380 = vmatprep.subr.bf16.mxu0 0
    %1381 = vmatpush2.bf16.msra.mxu0 %v1072
    %1382 = vmatprep.subr.bf16.mxu0 0
    %1383 = vmatpush2.bf16.msra.mxu0 %v1071
    %1384 = vmatprep.subr.bf16.mxu0 0
    %1385 = vmatpush2.bf16.msra.mxu0 %v1070
    %1386 = vmatprep.subr.bf16.mxu0 0
    %1387 = vmatpush2.bf16.msra.mxu0 %v1069
    %1388 = vmatprep.subr.bf16.mxu0 0
    %1389 = vmatpush2.bf16.msra.mxu0 %v1068
    %1390 = vmatprep.subr.bf16.mxu0 0
    %1391 = vmatpush2.bf16.msra.mxu0 %v1067
    %1392 = vmatprep.mubr.bf16.mxu0 %v133
    %1393 = vmatmul.mubr.bf16.gmra.mxu0 %v132
    %v1394 = vpop.f32.mrf.mxu0
    %v1395 = vadd.f32 %v469, %v1394
    %v1396 = vpop.f32.mrf.mxu0
    %v1397 = vpop.f32.mrf.mxu0
    %v1398 = vadd.f32 %v469, %v1397
    %v1399 = vpop.f32.mrf.mxu0
    %1400 = vmatprep.mubr.bf16.mxu0 %v152
    %1401 = vmatmul.mubr.bf16.gmra.mxu0 %v151
    %v1402 = vpop.f32.mrf.mxu0
    %v1403 = vadd.f32 %v469, %v1402
    %v1404 = vpop.f32.mrf.mxu0
    %v1405 = vpop.f32.mrf.mxu0
    %v1406 = vadd.f32 %v469, %v1405
    %v1407 = vpop.f32.mrf.mxu0
    %1408 = vdwg.mxu0
    %1409 = vmatprep.subr.bf16.mxu0 0
    %1410 = vmatpush1.bf16.msra.mxu0 %v1082
    %1411 = vmatprep.subr.bf16.mxu0 0
    %1412 = vmatpush1.bf16.msra.mxu0 %v1081
    %1413 = vmatprep.subr.bf16.mxu0 0
    %1414 = vmatpush1.bf16.msra.mxu0 %v1080
    %1415 = vmatprep.subr.bf16.mxu0 0
    %1416 = vmatpush1.bf16.msra.mxu0 %v1079
    %1417 = vmatprep.subr.bf16.mxu0 0
    %1418 = vmatpush1.bf16.msra.mxu0 %v1078
    %1419 = vmatprep.subr.bf16.mxu0 0
    %1420 = vmatpush1.bf16.msra.mxu0 %v1077
    %1421 = vmatprep.subr.bf16.mxu0 0
    %1422 = vmatpush1.bf16.msra.mxu0 %v1076
    %1423 = vmatprep.subr.bf16.mxu0 0
    %1424 = vmatpush1.bf16.msra.mxu0 %v1075
    %1425 = vmatprep.subr.bf16.mxu0 0
    %1426 = vmatpush2.bf16.msra.mxu0 %v1090
    %1427 = vmatprep.subr.bf16.mxu0 0
    %1428 = vmatpush2.bf16.msra.mxu0 %v1089
    %1429 = vmatprep.subr.bf16.mxu0 0
    %1430 = vmatpush2.bf16.msra.mxu0 %v1088
    %1431 = vmatprep.subr.bf16.mxu0 0
    %1432 = vmatpush2.bf16.msra.mxu0 %v1087
    %1433 = vmatprep.subr.bf16.mxu0 0
    %1434 = vmatpush2.bf16.msra.mxu0 %v1086
    %1435 = vmatprep.subr.bf16.mxu0 0
    %1436 = vmatpush2.bf16.msra.mxu0 %v1085
    %1437 = vmatprep.subr.bf16.mxu0 0
    %1438 = vmatpush2.bf16.msra.mxu0 %v1084
    %1439 = vmatprep.subr.bf16.mxu0 0
    %1440 = vmatpush2.bf16.msra.mxu0 %v1083
    %1441 = vmatprep.mubr.bf16.mxu0 %v135
    %1442 = vmatmul.mubr.bf16.gmra.mxu0 %v134
    %v1443 = vpop.f32.mrf.mxu0
    %v1444 = vadd.f32 %v1395, %v1443
    %v1445 = vpop.f32.mrf.mxu0
    %v1446 = vpop.f32.mrf.mxu0
    %v1447 = vadd.f32 %v1398, %v1446
    %v1448 = vpop.f32.mrf.mxu0
    %1449 = vmatprep.mubr.bf16.mxu0 %v154
    %1450 = vmatmul.mubr.bf16.gmra.mxu0 %v153
    %v1451 = vpop.f32.mrf.mxu0
    %v1452 = vadd.f32 %v1403, %v1451
    %v1453 = vpop.f32.mrf.mxu0
    %v1454 = vpop.f32.mrf.mxu0
    %v1455 = vadd.f32 %v1406, %v1454
    %v1456 = vpop.f32.mrf.mxu0
    %1457 = vdwg.mxu0
    %1458 = vmatprep.subr.bf16.mxu0 0
    %1459 = vmatpush1.bf16.msra.mxu0 %v1098
    %1460 = vmatprep.subr.bf16.mxu0 0
    %1461 = vmatpush1.bf16.msra.mxu0 %v1097
    %1462 = vmatprep.subr.bf16.mxu0 0
    %1463 = vmatpush1.bf16.msra.mxu0 %v1096
    %1464 = vmatprep.subr.bf16.mxu0 0
    %1465 = vmatpush1.bf16.msra.mxu0 %v1095
    %1466 = vmatprep.subr.bf16.mxu0 0
    %1467 = vmatpush1.bf16.msra.mxu0 %v1094
    %1468 = vmatprep.subr.bf16.mxu0 0
    %1469 = vmatpush1.bf16.msra.mxu0 %v1093
    %1470 = vmatprep.subr.bf16.mxu0 0
    %1471 = vmatpush1.bf16.msra.mxu0 %v1092
    %1472 = vmatprep.subr.bf16.mxu0 0
    %1473 = vmatpush1.bf16.msra.mxu0 %v1091
    %1474 = vmatprep.subr.bf16.mxu0 0
    %1475 = vmatpush2.bf16.msra.mxu0 %v1106
    %1476 = vmatprep.subr.bf16.mxu0 0
    %1477 = vmatpush2.bf16.msra.mxu0 %v1105
    %1478 = vmatprep.subr.bf16.mxu0 0
    %1479 = vmatpush2.bf16.msra.mxu0 %v1104
    %1480 = vmatprep.subr.bf16.mxu0 0
    %1481 = vmatpush2.bf16.msra.mxu0 %v1103
    %1482 = vmatprep.subr.bf16.mxu0 0
    %1483 = vmatpush2.bf16.msra.mxu0 %v1102
    %1484 = vmatprep.subr.bf16.mxu0 0
    %1485 = vmatpush2.bf16.msra.mxu0 %v1101
    %1486 = vmatprep.subr.bf16.mxu0 0
    %1487 = vmatpush2.bf16.msra.mxu0 %v1100
    %1488 = vmatprep.subr.bf16.mxu0 0
    %1489 = vmatpush2.bf16.msra.mxu0 %v1099
    %1490 = vmatprep.mubr.bf16.mxu0 %v137
    %1491 = vmatmul.mubr.bf16.gmra.mxu0 %v136
    %v1492 = vpop.f32.mrf.mxu0
    %v1493 = vadd.f32 %v1444, %v1492
    %v1494 = vpop.f32.mrf.mxu0
    %v1495 = vpop.f32.mrf.mxu0
    %v1496 = vadd.f32 %v1447, %v1495
    %v1497 = vpop.f32.mrf.mxu0
    %1498 = vmatprep.mubr.bf16.mxu0 %v156
    %1499 = vmatmul.mubr.bf16.gmra.mxu0 %v155
    %v1500 = vpop.f32.mrf.mxu0
    %v1501 = vadd.f32 %v1452, %v1500
    %v1502 = vpop.f32.mrf.mxu0
    %v1503 = vpop.f32.mrf.mxu0
    %v1504 = vadd.f32 %v1455, %v1503
    %v1505 = vpop.f32.mrf.mxu0
    %1506 = vdwg.mxu0
    %1507 = vmatprep.subr.bf16.mxu0 0
    %1508 = vmatpush1.bf16.msra.mxu0 %v1114
    %1509 = vmatprep.subr.bf16.mxu0 0
    %1510 = vmatpush1.bf16.msra.mxu0 %v1113
    %1511 = vmatprep.subr.bf16.mxu0 0
    %1512 = vmatpush1.bf16.msra.mxu0 %v1112
    %1513 = vmatprep.subr.bf16.mxu0 0
    %1514 = vmatpush1.bf16.msra.mxu0 %v1111
    %1515 = vmatprep.subr.bf16.mxu0 0
    %1516 = vmatpush1.bf16.msra.mxu0 %v1110
    %1517 = vmatprep.subr.bf16.mxu0 0
    %1518 = vmatpush1.bf16.msra.mxu0 %v1109
    %1519 = vmatprep.subr.bf16.mxu0 0
    %1520 = vmatpush1.bf16.msra.mxu0 %v1108
    %1521 = vmatprep.subr.bf16.mxu0 0
    %1522 = vmatpush1.bf16.msra.mxu0 %v1107
    %1523 = vmatprep.subr.bf16.mxu0 0
    %1524 = vmatpush2.bf16.msra.mxu0 %v1122
    %1525 = vmatprep.subr.bf16.mxu0 0
    %1526 = vmatpush2.bf16.msra.mxu0 %v1121
    %1527 = vmatprep.subr.bf16.mxu0 0
    %1528 = vmatpush2.bf16.msra.mxu0 %v1120
    %1529 = vmatprep.subr.bf16.mxu0 0
    %1530 = vmatpush2.bf16.msra.mxu0 %v1119
    %1531 = vmatprep.subr.bf16.mxu0 0
    %1532 = vmatpush2.bf16.msra.mxu0 %v1118
    %1533 = vmatprep.subr.bf16.mxu0 0
    %1534 = vmatpush2.bf16.msra.mxu0 %v1117
    %1535 = vmatprep.subr.bf16.mxu0 0
    %1536 = vmatpush2.bf16.msra.mxu0 %v1116
    %1537 = vmatprep.subr.bf16.mxu0 0
    %1538 = vmatpush2.bf16.msra.mxu0 %v1115
    %1539 = vmatprep.mubr.bf16.mxu0 %v139
    %1540 = vmatmul.mubr.bf16.gmra.mxu0 %v138
    %v1541 = vpop.f32.mrf.mxu0
    %v1542 = vadd.f32 %v1493, %v1541
    %v1543 = vpop.f32.mrf.mxu0
    %v1544 = vpop.f32.mrf.mxu0
    %v1545 = vadd.f32 %v1496, %v1544
    %v1546 = vpop.f32.mrf.mxu0
    %1547 = vmatprep.mubr.bf16.mxu0 %v158
    %1548 = vmatmul.mubr.bf16.gmra.mxu0 %v157
    %v1549 = vpop.f32.mrf.mxu0
    %v1550 = vadd.f32 %v1501, %v1549
    %v1551 = vpop.f32.mrf.mxu0
    %v1552 = vpop.f32.mrf.mxu0
    %v1553 = vadd.f32 %v1504, %v1552
    %v1554 = vpop.f32.mrf.mxu0
    %1555 = vdwg.mxu0
    %1556 = vmatprep.subr.bf16.mxu0 0
    %1557 = vmatpush1.bf16.msra.mxu0 %v1130
    %1558 = vmatprep.subr.bf16.mxu0 0
    %1559 = vmatpush1.bf16.msra.mxu0 %v1129
    %1560 = vmatprep.subr.bf16.mxu0 0
    %1561 = vmatpush1.bf16.msra.mxu0 %v1128
    %1562 = vmatprep.subr.bf16.mxu0 0
    %1563 = vmatpush1.bf16.msra.mxu0 %v1127
    %1564 = vmatprep.subr.bf16.mxu0 0
    %1565 = vmatpush1.bf16.msra.mxu0 %v1126
    %1566 = vmatprep.subr.bf16.mxu0 0
    %1567 = vmatpush1.bf16.msra.mxu0 %v1125
    %1568 = vmatprep.subr.bf16.mxu0 0
    %1569 = vmatpush1.bf16.msra.mxu0 %v1124
    %1570 = vmatprep.subr.bf16.mxu0 0
    %1571 = vmatpush1.bf16.msra.mxu0 %v1123
    %1572 = vmatprep.subr.bf16.mxu0 0
    %1573 = vmatpush2.bf16.msra.mxu0 %v1138
    %1574 = vmatprep.subr.bf16.mxu0 0
    %1575 = vmatpush2.bf16.msra.mxu0 %v1137
    %1576 = vmatprep.subr.bf16.mxu0 0
    %1577 = vmatpush2.bf16.msra.mxu0 %v1136
    %1578 = vmatprep.subr.bf16.mxu0 0
    %1579 = vmatpush2.bf16.msra.mxu0 %v1135
    %1580 = vmatprep.subr.bf16.mxu0 0
    %1581 = vmatpush2.bf16.msra.mxu0 %v1134
    %1582 = vmatprep.subr.bf16.mxu0 0
    %1583 = vmatpush2.bf16.msra.mxu0 %v1133
    %1584 = vmatprep.subr.bf16.mxu0 0
    %1585 = vmatpush2.bf16.msra.mxu0 %v1132
    %1586 = vmatprep.subr.bf16.mxu0 0
    %1587 = vmatpush2.bf16.msra.mxu0 %v1131
    %1588 = vmatprep.mubr.bf16.mxu0 %v141
    %1589 = vmatmul.mubr.bf16.gmra.mxu0 %v140
    %v1590 = vpop.f32.mrf.mxu0
    %v1591 = vadd.f32 %v1542, %v1590
    %v1592 = vpop.f32.mrf.mxu0
    %v1593 = vpop.f32.mrf.mxu0
    %v1594 = vadd.f32 %v1545, %v1593
    %v1595 = vpop.f32.mrf.mxu0
    %1596 = vmatprep.mubr.bf16.mxu0 %v160
    %1597 = vmatmul.mubr.bf16.gmra.mxu0 %v159
    %v1598 = vpop.f32.mrf.mxu0
    %v1599 = vadd.f32 %v1550, %v1598
    %v1600 = vpop.f32.mrf.mxu0
    %v1601 = vpop.f32.mrf.mxu0
    %v1602 = vadd.f32 %v1553, %v1601
    %v1603 = vpop.f32.mrf.mxu0
    %1604 = vdwg.mxu0
    %1605 = vmatprep.subr.bf16.mxu0 0
    %1606 = vmatpush1.bf16.msra.mxu0 %v1146
    %1607 = vmatprep.subr.bf16.mxu0 0
    %1608 = vmatpush1.bf16.msra.mxu0 %v1145
    %1609 = vmatprep.subr.bf16.mxu0 0
    %1610 = vmatpush1.bf16.msra.mxu0 %v1144
    %1611 = vmatprep.subr.bf16.mxu0 0
    %1612 = vmatpush1.bf16.msra.mxu0 %v1143
    %1613 = vmatprep.subr.bf16.mxu0 0
    %1614 = vmatpush1.bf16.msra.mxu0 %v1142
    %1615 = vmatprep.subr.bf16.mxu0 0
    %1616 = vmatpush1.bf16.msra.mxu0 %v1141
    %1617 = vmatprep.subr.bf16.mxu0 0
    %1618 = vmatpush1.bf16.msra.mxu0 %v1140
    %1619 = vmatprep.subr.bf16.mxu0 0
    %1620 = vmatpush1.bf16.msra.mxu0 %v1139
    %1621 = vmatprep.subr.bf16.mxu0 0
    %1622 = vmatpush2.bf16.msra.mxu0 %v1154
    %1623 = vmatprep.subr.bf16.mxu0 0
    %1624 = vmatpush2.bf16.msra.mxu0 %v1153
    %1625 = vmatprep.subr.bf16.mxu0 0
    %1626 = vmatpush2.bf16.msra.mxu0 %v1152
    %1627 = vmatprep.subr.bf16.mxu0 0
    %1628 = vmatpush2.bf16.msra.mxu0 %v1151
    %1629 = vmatprep.subr.bf16.mxu0 0
    %1630 = vmatpush2.bf16.msra.mxu0 %v1150
    %1631 = vmatprep.subr.bf16.mxu0 0
    %1632 = vmatpush2.bf16.msra.mxu0 %v1149
    %1633 = vmatprep.subr.bf16.mxu0 0
    %1634 = vmatpush2.bf16.msra.mxu0 %v1148
    %1635 = vmatprep.subr.bf16.mxu0 0
    %1636 = vmatpush2.bf16.msra.mxu0 %v1147
    %1637 = vmatprep.mubr.bf16.mxu0 %v143
    %1638 = vmatmul.mubr.bf16.gmra.mxu0 %v142
    %v1639 = vpop.f32.mrf.mxu0
    %v1640 = vadd.f32 %v1591, %v1639
    %v1641 = vpop.f32.mrf.mxu0
    %v1642 = vpop.f32.mrf.mxu0
    %v1643 = vadd.f32 %v1594, %v1642
    %v1644 = vpop.f32.mrf.mxu0
    %1645 = vmatprep.mubr.bf16.mxu0 %v162
    %1646 = vmatmul.mubr.bf16.gmra.mxu0 %v161
    %v1647 = vpop.f32.mrf.mxu0
    %v1648 = vadd.f32 %v1599, %v1647
    %v1649 = vpop.f32.mrf.mxu0
    %v1650 = vpop.f32.mrf.mxu0
    %v1651 = vadd.f32 %v1602, %v1650
    %v1652 = vpop.f32.mrf.mxu0
    %1653 = vdwg.mxu0
    %1654 = vmatprep.subr.bf16.mxu0 0
    %1655 = vmatpush1.bf16.msra.mxu0 %v1162
    %1656 = vmatprep.subr.bf16.mxu0 0
    %1657 = vmatpush1.bf16.msra.mxu0 %v1161
    %1658 = vmatprep.subr.bf16.mxu0 0
    %1659 = vmatpush1.bf16.msra.mxu0 %v1160
    %1660 = vmatprep.subr.bf16.mxu0 0
    %1661 = vmatpush1.bf16.msra.mxu0 %v1159
    %1662 = vmatprep.subr.bf16.mxu0 0
    %1663 = vmatpush1.bf16.msra.mxu0 %v1158
    %1664 = vmatprep.subr.bf16.mxu0 0
    %1665 = vmatpush1.bf16.msra.mxu0 %v1157
    %1666 = vmatprep.subr.bf16.mxu0 0
    %1667 = vmatpush1.bf16.msra.mxu0 %v1156
    %1668 = vmatprep.subr.bf16.mxu0 0
    %1669 = vmatpush1.bf16.msra.mxu0 %v1155
    %1670 = vmatprep.subr.bf16.mxu0 0
    %1671 = vmatpush2.bf16.msra.mxu0 %v1170
    %1672 = vmatprep.subr.bf16.mxu0 0
    %1673 = vmatpush2.bf16.msra.mxu0 %v1169
    %1674 = vmatprep.subr.bf16.mxu0 0
    %1675 = vmatpush2.bf16.msra.mxu0 %v1168
    %1676 = vmatprep.subr.bf16.mxu0 0
    %1677 = vmatpush2.bf16.msra.mxu0 %v1167
    %1678 = vmatprep.subr.bf16.mxu0 0
    %1679 = vmatpush2.bf16.msra.mxu0 %v1166
    %1680 = vmatprep.subr.bf16.mxu0 0
    %1681 = vmatpush2.bf16.msra.mxu0 %v1165
    %1682 = vmatprep.subr.bf16.mxu0 0
    %1683 = vmatpush2.bf16.msra.mxu0 %v1164
    %1684 = vmatprep.subr.bf16.mxu0 0
    %1685 = vmatpush2.bf16.msra.mxu0 %v1163
    %1686 = vmatprep.mubr.bf16.mxu0 %v145
    %1687 = vmatmul.mubr.bf16.gmra.mxu0 %v144
    %v1688 = vpop.f32.mrf.mxu0
    %v1689 = vadd.f32 %v1640, %v1688
    %v1690 = vpop.f32.mrf.mxu0
    %v1691 = vpop.f32.mrf.mxu0
    %v1692 = vadd.f32 %v1643, %v1691
    %v1693 = vpop.f32.mrf.mxu0
    %1694 = vmatprep.mubr.bf16.mxu0 %v164
    %1695 = vmatmul.mubr.bf16.gmra.mxu0 %v163
    %v1696 = vpop.f32.mrf.mxu0
    %v1697 = vadd.f32 %v1648, %v1696
    %v1698 = vpop.f32.mrf.mxu0
    %v1699 = vpop.f32.mrf.mxu0
    %v1700 = vadd.f32 %v1651, %v1699
    %v1701 = vpop.f32.mrf.mxu0
    %1702 = vdwg.mxu0
    %1703 = vmatprep.subr.bf16.mxu0 0
    %1704 = vmatpush1.bf16.msra.mxu0 %v1178
    %1705 = vmatprep.subr.bf16.mxu0 0
    %1706 = vmatpush1.bf16.msra.mxu0 %v1177
    %1707 = vmatprep.subr.bf16.mxu0 0
    %1708 = vmatpush1.bf16.msra.mxu0 %v1176
    %1709 = vmatprep.subr.bf16.mxu0 0
    %1710 = vmatpush1.bf16.msra.mxu0 %v1175
    %1711 = vmatprep.subr.bf16.mxu0 0
    %1712 = vmatpush1.bf16.msra.mxu0 %v1174
    %1713 = vmatprep.subr.bf16.mxu0 0
    %1714 = vmatpush1.bf16.msra.mxu0 %v1173
    %1715 = vmatprep.subr.bf16.mxu0 0
    %1716 = vmatpush1.bf16.msra.mxu0 %v1172
    %1717 = vmatprep.subr.bf16.mxu0 0
    %1718 = vmatpush1.bf16.msra.mxu0 %v1171
    %1719 = vmatprep.subr.bf16.mxu0 0
    %1720 = vmatpush2.bf16.msra.mxu0 %v1186
    %1721 = vmatprep.subr.bf16.mxu0 0
    %1722 = vmatpush2.bf16.msra.mxu0 %v1185
    %1723 = vmatprep.subr.bf16.mxu0 0
    %1724 = vmatpush2.bf16.msra.mxu0 %v1184
    %1725 = vmatprep.subr.bf16.mxu0 0
    %1726 = vmatpush2.bf16.msra.mxu0 %v1183
    %1727 = vmatprep.subr.bf16.mxu0 0
    %1728 = vmatpush2.bf16.msra.mxu0 %v1182
    %1729 = vmatprep.subr.bf16.mxu0 0
    %1730 = vmatpush2.bf16.msra.mxu0 %v1181
    %1731 = vmatprep.subr.bf16.mxu0 0
    %1732 = vmatpush2.bf16.msra.mxu0 %v1180
    %1733 = vmatprep.subr.bf16.mxu0 0
    %1734 = vmatpush2.bf16.msra.mxu0 %v1179
    %1735 = vmatprep.mubr.bf16.mxu0 %v147
    %1736 = vmatmul.mubr.bf16.gmra.mxu0 %v146
    %v1737 = vpop.f32.mrf.mxu0
    %v1738 = vadd.f32 %v1689, %v1737
    %v1739 = vpop.f32.mrf.mxu0
    %v1740 = vpop.f32.mrf.mxu0
    %v1741 = vadd.f32 %v1692, %v1740
    %v1742 = vpop.f32.mrf.mxu0
    %1743 = vmatprep.mubr.bf16.mxu0 %v166
    %1744 = vmatmul.mubr.bf16.gmra.mxu0 %v165
    %v1745 = vpop.f32.mrf.mxu0
    %v1746 = vadd.f32 %v1697, %v1745
    %v1747 = vpop.f32.mrf.mxu0
    %v1748 = vpop.f32.mrf.mxu0
    %v1749 = vadd.f32 %v1700, %v1748
    %v1750 = vpop.f32.mrf.mxu0
    %1751 = vdwg.mxu0
    %1752 = vmatprep.subr.bf16.mxu0 0
    %1753 = vmatpush1.bf16.msra.mxu0 %v1194
    %1754 = vmatprep.subr.bf16.mxu0 0
    %1755 = vmatpush1.bf16.msra.mxu0 %v1193
    %1756 = vmatprep.subr.bf16.mxu0 0
    %1757 = vmatpush1.bf16.msra.mxu0 %v1192
    %1758 = vmatprep.subr.bf16.mxu0 0
    %1759 = vmatpush1.bf16.msra.mxu0 %v1191
    %1760 = vmatprep.subr.bf16.mxu0 0
    %1761 = vmatpush1.bf16.msra.mxu0 %v1190
    %1762 = vmatprep.subr.bf16.mxu0 0
    %1763 = vmatpush1.bf16.msra.mxu0 %v1189
    %1764 = vmatprep.subr.bf16.mxu0 0
    %1765 = vmatpush1.bf16.msra.mxu0 %v1188
    %1766 = vmatprep.subr.bf16.mxu0 0
    %1767 = vmatpush1.bf16.msra.mxu0 %v1187
    %1768 = vmatprep.subr.bf16.mxu0 0
    %1769 = vmatpush2.bf16.msra.mxu0 %v1202
    %1770 = vmatprep.subr.bf16.mxu0 0
    %1771 = vmatpush2.bf16.msra.mxu0 %v1201
    %1772 = vmatprep.subr.bf16.mxu0 0
    %1773 = vmatpush2.bf16.msra.mxu0 %v1200
    %1774 = vmatprep.subr.bf16.mxu0 0
    %1775 = vmatpush2.bf16.msra.mxu0 %v1199
    %1776 = vmatprep.subr.bf16.mxu0 0
    %1777 = vmatpush2.bf16.msra.mxu0 %v1198
    %1778 = vmatprep.subr.bf16.mxu0 0
    %1779 = vmatpush2.bf16.msra.mxu0 %v1197
    %1780 = vmatprep.subr.bf16.mxu0 0
    %1781 = vmatpush2.bf16.msra.mxu0 %v1196
    %1782 = vmatprep.subr.bf16.mxu0 0
    %1783 = vmatpush2.bf16.msra.mxu0 %v1195
    %1784 = vmatprep.mubr.bf16.mxu0 %v149
    %1785 = vmatmul.mubr.bf16.gmra.mxu0 %v148
    %v1786 = vpop.f32.mrf.mxu0
    %v1787 = vadd.f32 %v1738, %v1786
    %v1788 = vpop.f32.mrf.mxu0
    %v1789 = vpop.f32.mrf.mxu0
    %v1790 = vadd.f32 %v1741, %v1789
    %v1791 = vpop.f32.mrf.mxu0
    %1792 = vmatprep.mubr.bf16.mxu0 %v168
    %1793 = vmatmul.mubr.bf16.gmra.mxu0 %v167
    %v1794 = vpop.f32.mrf.mxu0
    %v1795 = vadd.f32 %v1746, %v1794
    %v1796 = vpop.f32.mrf.mxu0
    %v1797 = vpop.f32.mrf.mxu0
    %v1798 = vadd.f32 %v1749, %v1797
    %v1799 = vpop.f32.mrf.mxu0
    %1800 = vdwg.mxu0
    %1801 = vmatprep.subr.bf16.mxu0 0
    %1802 = vmatpush1.bf16.msra.mxu0 0
    %1803 = vmatprep.subr.bf16.mxu0 0
    %1804 = vmatpush1.bf16.msra.mxu0 0
    %1805 = vmatprep.subr.bf16.mxu0 0
    %1806 = vmatpush1.bf16.msra.mxu0 0
    %1807 = vmatprep.subr.bf16.mxu0 0
    %1808 = vmatpush1.bf16.msra.mxu0 0
    %1809 = vmatprep.subr.bf16.mxu0 0
    %1810 = vmatpush1.bf16.msra.mxu0 0
    %1811 = vmatprep.subr.bf16.mxu0 0
    %1812 = vmatpush1.bf16.msra.mxu0 %v1205
    %1813 = vmatprep.subr.bf16.mxu0 0
    %1814 = vmatpush1.bf16.msra.mxu0 %v1204
    %1815 = vmatprep.subr.bf16.mxu0 0
    %1816 = vmatpush1.bf16.msra.mxu0 %v1203
    %1817 = vmatprep.subr.bf16.mxu0 0
    %1818 = vmatpush2.bf16.msra.mxu0 0
    %1819 = vmatprep.subr.bf16.mxu0 0
    %1820 = vmatpush2.bf16.msra.mxu0 0
    %1821 = vmatprep.subr.bf16.mxu0 0
    %1822 = vmatpush2.bf16.msra.mxu0 0
    %1823 = vmatprep.subr.bf16.mxu0 0
    %1824 = vmatpush2.bf16.msra.mxu0 0
    %1825 = vmatprep.subr.bf16.mxu0 0
    %1826 = vmatpush2.bf16.msra.mxu0 0
    %1827 = vmatprep.subr.bf16.mxu0 0
    %1828 = vmatpush2.bf16.msra.mxu0 0
    %1829 = vmatprep.subr.bf16.mxu0 0
    %1830 = vmatpush2.bf16.msra.mxu0 0
    %1831 = vmatprep.subr.bf16.mxu0 0
    %1832 = vmatpush2.bf16.msra.mxu0 0
    %1833 = vmatprep.mubr.bf16.mxu0 0
    %1834 = vmatmul.mubr.bf16.gmra.mxu0 %v1355
    %v1835 = vpop.f32.mrf.mxu0
    %v1836 = vadd.f32 %v1787, %v1835
    %v1837 = vpop.f32.mrf.mxu0
    %v1838 = vpop.f32.mrf.mxu0
    %v1839 = vadd.f32 %v1790, %v1838
    %v1840 = vpop.f32.mrf.mxu0
    %1841 = vmatprep.mubr.bf16.mxu0 0
    %1842 = vmatmul.mubr.bf16.gmra.mxu0 %v1358
    %v1843 = vpop.f32.mrf.mxu0
    %v1844 = vadd.f32 %v1795, %v1843
    %v1845 = vpop.f32.mrf.mxu0
    %v1846 = vpop.f32.mrf.mxu0
    %v1847 = vadd.f32 %v1798, %v1846
    %v1848 = vpop.f32.mrf.mxu0
    %1849 = vdwg.mxu0
    %v1850 = vmax.f32 %v1836, 0.0
    %v1851 = vmax.f32 %v1839, 0.0
    %v1852 = vmax.f32 %v1844, 0.0
    %v1853 = vmax.f32 %v1847, 0.0
    %v1854 = vld [vmem:[%s3] sm:$0xff]
    %v1855 = vld [vmem:[%s3 + $0x8] sm:$0xff]
    %v1856 = vld [vmem:[%s3 + $0x10] sm:$0xff]
    %v1857 = vld [vmem:[%s3 + $0x18] sm:$0xff]
    %v1858 = vld [vmem:[%s3 + $0x20] sm:$0xff]
    %v1859 = vld [vmem:[%s3 + $0x28] sm:$0xff]
    %v1860 = vld [vmem:[%s3 + $0x30] sm:$0xff]
    %v1861 = vld [vmem:[%s3 + $0x38] sm:$0xff]
    %v1862 = vld [vmem:[%s3 + $0x40] sm:$0xff]
    %v1863 = vld [vmem:[%s3 + $0x48] sm:$0xff]
    %v1864 = vld [vmem:[%s3 + $0x50] sm:$0xff]
    %v1865 = vld [vmem:[%s3 + $0x58] sm:$0xff]
    %v1866 = vld [vmem:[%s3 + $0x60] sm:$0xff]
    %v1867 = vld [vmem:[%s3 + $0x68] sm:$0xff]
    %v1868 = vld [vmem:[%s3 + $0x70] sm:$0xff]
    %v1869 = vld [vmem:[%s3 + $0x78] sm:$0xff]
    %v1870 = vld [vmem:[%s4] sm:$0x1]
    %v1872 = vlaneseq
    %v1873 = vshrl.u32 %v1872, 7
    %v1874 = vsub.s32 0, %v1873
    %v1875 = vrot.slane %v1870, %v1874
    %1877 = vmatprep.subr.mxu0 0.0
    %1878 = vmatpush1.msra.mxu0 %v1869
    %1879 = vmatprep.subr.mxu0 0.0
    %1880 = vmatpush1.msra.mxu0 %v1868
    %1881 = vmatprep.subr.mxu0 0.0
    %1882 = vmatpush1.msra.mxu0 %v1867
    %1883 = vmatprep.subr.mxu0 0.0
    %1884 = vmatpush1.msra.mxu0 %v1866
    %1885 = vmatprep.subr.mxu0 0.0
    %1886 = vmatpush1.msra.mxu0 %v1865
    %1887 = vmatprep.subr.mxu0 0.0
    %1888 = vmatpush1.msra.mxu0 %v1864
    %1889 = vmatprep.subr.mxu0 0.0
    %1890 = vmatpush1.msra.mxu0 %v1863
    %1891 = vmatprep.subr.mxu0 0.0
    %1892 = vmatpush1.msra.mxu0 %v1862
    %1893 = vmatprep.subr.mxu0 0.0
    %1894 = vmatpush1.msra.mxu0 %v1861
    %1895 = vmatprep.subr.mxu0 0.0
    %1896 = vmatpush1.msra.mxu0 %v1860
    %1897 = vmatprep.subr.mxu0 0.0
    %1898 = vmatpush1.msra.mxu0 %v1859
    %1899 = vmatprep.subr.mxu0 0.0
    %1900 = vmatpush1.msra.mxu0 %v1858
    %1901 = vmatprep.subr.mxu0 0.0
    %1902 = vmatpush1.msra.mxu0 %v1857
    %1903 = vmatprep.subr.mxu0 0.0
    %1904 = vmatpush1.msra.mxu0 %v1856
    %1905 = vmatprep.subr.mxu0 0.0
    %1906 = vmatpush1.msra.mxu0 %v1855
    %1907 = vmatprep.subr.mxu0 0.0
    %1908 = vmatpush1.msra.mxu0 %v1854
    %1909 = vmatprep.subr.mxu0 0.0
    %1910 = vmatpush2.msra.mxu0 0.0
    %1911 = vmatprep.subr.mxu0 0.0
    %1912 = vmatpush2.msra.mxu0 0.0
    %1913 = vmatprep.subr.mxu0 0.0
    %1914 = vmatpush2.msra.mxu0 0.0
    %1915 = vmatprep.subr.mxu0 0.0
    %1916 = vmatpush2.msra.mxu0 0.0
    %1917 = vmatprep.subr.mxu0 0.0
    %1918 = vmatpush2.msra.mxu0 0.0
    %1919 = vmatprep.subr.mxu0 0.0
    %1920 = vmatpush2.msra.mxu0 0.0
    %1921 = vmatprep.subr.mxu0 0.0
    %1922 = vmatpush2.msra.mxu0 0.0
    %1923 = vmatprep.subr.mxu0 0.0
    %1924 = vmatpush2.msra.mxu0 0.0
    %1925 = vmatprep.subr.mxu0 0.0
    %1926 = vmatpush2.msra.mxu0 0.0
    %1927 = vmatprep.subr.mxu0 0.0
    %1928 = vmatpush2.msra.mxu0 0.0
    %1929 = vmatprep.subr.mxu0 0.0
    %1930 = vmatpush2.msra.mxu0 0.0
    %1931 = vmatprep.subr.mxu0 0.0
    %1932 = vmatpush2.msra.mxu0 0.0
    %1933 = vmatprep.subr.mxu0 0.0
    %1934 = vmatpush2.msra.mxu0 0.0
    %1935 = vmatprep.subr.mxu0 0.0
    %1936 = vmatpush2.msra.mxu0 0.0
    %1937 = vmatprep.subr.mxu0 0.0
    %1938 = vmatpush2.msra.mxu0 0.0
    %1939 = vmatprep.subr.mxu0 0.0
    %1940 = vmatpush2.msra.mxu0 0.0
    %1941 = vmatprep.mubr.f32.mxu0 0.0
    %1942 = vmatmul.mubr.f32.gmra.mxu0 %v1850
    %v1943 = vpop.f32.mrf.mxu0
    %v1944 = vadd.f32 %v1875, %v1943
    %v1945 = vpop.f32.mrf.mxu0
    %1946 = vmatprep.mubr.f32.mxu0 0.0
    %1947 = vmatmul.mubr.f32.gmra.mxu0 %v1851
    %v1948 = vpop.f32.mrf.mxu0
    %v1949 = vadd.f32 %v1875, %v1948
    %v1950 = vpop.f32.mrf.mxu0
    %1951 = vmatprep.mubr.f32.mxu0 0.0
    %1952 = vmatmul.mubr.f32.gmra.mxu0 %v1852
    %v1953 = vpop.f32.mrf.mxu0
    %v1954 = vadd.f32 %v1875, %v1953
    %v1955 = vpop.f32.mrf.mxu0
    %1956 = vmatprep.mubr.f32.mxu0 0.0
    %1957 = vmatmul.mubr.f32.gmra.mxu0 %v1853
    %v1958 = vpop.f32.mrf.mxu0
    %v1959 = vadd.f32 %v1875, %v1958
    %v1960 = vpop.f32.mrf.mxu0
    %1961 = vdwg.mxu0
    %v1962 = vmax.f32 %v1944, 0.0
    %v1963 = vmax.f32 %v1949, 0.0
    %v1964 = vmax.f32 %v1954, 0.0
    %v1965 = vmax.f32 %v1959, 0.0
    %v1966 = vld [vmem:[%s5] sm:$0xff]
    %v1967 = vld [vmem:[%s5 + $0x8] sm:$0xff]
    %v1968 = vld [vmem:[%s5 + $0x10] sm:$0xff]
    %v1969 = vld [vmem:[%s5 + $0x18] sm:$0xff]
    %v1970 = vld [vmem:[%s5 + $0x20] sm:$0xff]
    %v1971 = vld [vmem:[%s5 + $0x28] sm:$0xff]
    %v1972 = vld [vmem:[%s5 + $0x30] sm:$0xff]
    %v1973 = vld [vmem:[%s5 + $0x38] sm:$0xff]
    %v1974 = vld [vmem:[%s5 + $0x40] sm:$0xff]
    %v1975 = vld [vmem:[%s5 + $0x48] sm:$0xff]
    %v1976 = vld [vmem:[%s5 + $0x50] sm:$0xff]
    %v1977 = vld [vmem:[%s5 + $0x58] sm:$0xff]
    %v1978 = vld [vmem:[%s5 + $0x60] sm:$0xff]
    %v1979 = vld [vmem:[%s5 + $0x68] sm:$0xff]
    %v1980 = vld [vmem:[%s5 + $0x70] sm:$0xff]
    %v1981 = vld [vmem:[%s5 + $0x78] sm:$0xff]
    %v1982 = vld [vmem:[%s6] sm:$0x1]
    %v1984 = vlaneseq
    %v1985 = vshrl.u32 %v1984, 7
    %v1986 = vsub.s32 0, %v1985
    %v1987 = vrot.slane %v1982, %v1986
    %1989 = vmatprep.subr.mxu0 0.0
    %1990 = vmatpush1.msra.mxu0 %v1981
    %1991 = vmatprep.subr.mxu0 0.0
    %1992 = vmatpush1.msra.mxu0 %v1980
    %1993 = vmatprep.subr.mxu0 0.0
    %1994 = vmatpush1.msra.mxu0 %v1979
    %1995 = vmatprep.subr.mxu0 0.0
    %1996 = vmatpush1.msra.mxu0 %v1978
    %1997 = vmatprep.subr.mxu0 0.0
    %1998 = vmatpush1.msra.mxu0 %v1977
    %1999 = vmatprep.subr.mxu0 0.0
    %2000 = vmatpush1.msra.mxu0 %v1976
    %2001 = vmatprep.subr.mxu0 0.0
    %2002 = vmatpush1.msra.mxu0 %v1975
    %2003 = vmatprep.subr.mxu0 0.0
    %2004 = vmatpush1.msra.mxu0 %v1974
    %2005 = vmatprep.subr.mxu0 0.0
    %2006 = vmatpush1.msra.mxu0 %v1973
    %2007 = vmatprep.subr.mxu0 0.0
    %2008 = vmatpush1.msra.mxu0 %v1972
    %2009 = vmatprep.subr.mxu0 0.0
    %2010 = vmatpush1.msra.mxu0 %v1971
    %2011 = vmatprep.subr.mxu0 0.0
    %2012 = vmatpush1.msra.mxu0 %v1970
    %2013 = vmatprep.subr.mxu0 0.0
    %2014 = vmatpush1.msra.mxu0 %v1969
    %2015 = vmatprep.subr.mxu0 0.0
    %2016 = vmatpush1.msra.mxu0 %v1968
    %2017 = vmatprep.subr.mxu0 0.0
    %2018 = vmatpush1.msra.mxu0 %v1967
    %2019 = vmatprep.subr.mxu0 0.0
    %2020 = vmatpush1.msra.mxu0 %v1966
    %2021 = vmatprep.subr.mxu0 0.0
    %2022 = vmatpush2.msra.mxu0 0.0
    %2023 = vmatprep.subr.mxu0 0.0
    %2024 = vmatpush2.msra.mxu0 0.0
    %2025 = vmatprep.subr.mxu0 0.0
    %2026 = vmatpush2.msra.mxu0 0.0
    %2027 = vmatprep.subr.mxu0 0.0
    %2028 = vmatpush2.msra.mxu0 0.0
    %2029 = vmatprep.subr.mxu0 0.0
    %2030 = vmatpush2.msra.mxu0 0.0
    %2031 = vmatprep.subr.mxu0 0.0
    %2032 = vmatpush2.msra.mxu0 0.0
    %2033 = vmatprep.subr.mxu0 0.0
    %2034 = vmatpush2.msra.mxu0 0.0
    %2035 = vmatprep.subr.mxu0 0.0
    %2036 = vmatpush2.msra.mxu0 0.0
    %2037 = vmatprep.subr.mxu0 0.0
    %2038 = vmatpush2.msra.mxu0 0.0
    %2039 = vmatprep.subr.mxu0 0.0
    %2040 = vmatpush2.msra.mxu0 0.0
    %2041 = vmatprep.subr.mxu0 0.0
    %2042 = vmatpush2.msra.mxu0 0.0
    %2043 = vmatprep.subr.mxu0 0.0
    %2044 = vmatpush2.msra.mxu0 0.0
    %2045 = vmatprep.subr.mxu0 0.0
    %2046 = vmatpush2.msra.mxu0 0.0
    %2047 = vmatprep.subr.mxu0 0.0
    %2048 = vmatpush2.msra.mxu0 0.0
    %2049 = vmatprep.subr.mxu0 0.0
    %2050 = vmatpush2.msra.mxu0 0.0
    %2051 = vmatprep.subr.mxu0 0.0
    %2052 = vmatpush2.msra.mxu0 0.0
    %2053 = vmatprep.mubr.f32.mxu0 0.0
    %2054 = vmatmul.mubr.f32.gmra.mxu0 %v1962
    %v2055 = vpop.f32.mrf.mxu0
    %v2056 = vadd.f32 %v1987, %v2055
    %v2057 = vpop.f32.mrf.mxu0
    %2058 = vmatprep.mubr.f32.mxu0 0.0
    %2059 = vmatmul.mubr.f32.gmra.mxu0 %v1963
    %v2060 = vpop.f32.mrf.mxu0
    %v2061 = vadd.f32 %v1987, %v2060
    %v2062 = vpop.f32.mrf.mxu0
    %2063 = vmatprep.mubr.f32.mxu0 0.0
    %2064 = vmatmul.mubr.f32.gmra.mxu0 %v1964
    %v2065 = vpop.f32.mrf.mxu0
    %v2066 = vadd.f32 %v1987, %v2065
    %v2067 = vpop.f32.mrf.mxu0
    %2068 = vmatprep.mubr.f32.mxu0 0.0
    %2069 = vmatmul.mubr.f32.gmra.mxu0 %v1965
    %v2070 = vpop.f32.mrf.mxu0
    %v2071 = vadd.f32 %v1987, %v2070
    %v2072 = vpop.f32.mrf.mxu0
    %2073 = vdwg.mxu0
    %vm2074 = vcmask 80896
    %v2075 = vsel %vm2074, %v2056, -inf
    %2076 = vmax.xlane.f32.xlu0 %v2075
    %v2077 = vpop.xlane.xlu0 %2076
    %v2078 = vsel %vm2074, %v2061, -inf
    %2079 = vmax.xlane.f32.xlu0 %v2078
    %v2080 = vpop.xlane.xlu0 %2079
    %v2081 = vsel %vm2074, %v2066, -inf
    %2082 = vmax.xlane.f32.xlu0 %v2081
    %v2083 = vpop.xlane.xlu0 %2082
    %v2084 = vsel %vm2074, %v2071, -inf
    %2085 = vmax.xlane.f32.xlu0 %v2084
    %v2086 = vpop.xlane.xlu0 %2085
    %v2087 = vsub.f32 %v2056, %v2077
    %v2088 = vsub.f32 %v2061, %v2080
    %v2089 = vsub.f32 %v2066, %v2083
    %v2090 = vsub.f32 %v2071, %v2086
    %v2091 = vmul.f32 %v2087, 1.442695
    %v2092 = vpow.pop %v2091
    %v2093 = vmul.f32 %v2088, 1.442695
    %v2094 = vpow.pop %v2093
    %v2095 = vmul.f32 %v2089, 1.442695
    %v2096 = vpow.pop %v2095
    %v2097 = vmul.f32 %v2090, 1.442695
    %v2098 = vpow.pop %v2097
    %v2099 = vsel %vm2074, %v2092, 0.0
    %2100 = vadd.xlane.f32.xlu0 %v2099
    %v2101 = vpop.xlane.xlu0 %2100
    %v2102 = vsel %vm2074, %v2094, 0.0
    %2103 = vadd.xlane.f32.xlu0 %v2102
    %v2104 = vpop.xlane.xlu0 %2103
    %v2105 = vsel %vm2074, %v2096, 0.0
    %2106 = vadd.xlane.f32.xlu0 %v2105
    %v2107 = vpop.xlane.xlu0 %2106
    %v2108 = vsel %vm2074, %v2098, 0.0
    %2109 = vadd.xlane.f32.xlu0 %v2108
    %v2110 = vpop.xlane.xlu0 %2109
    %v2111 = vrcp.pop %v2101
    %v2112 = vmul.f32 %v2092, %v2111
    %v2113 = vrcp.pop %v2104
    %v2114 = vmul.f32 %v2094, %v2113
    %v2115 = vrcp.pop %v2107
    %v2116 = vmul.f32 %v2096, %v2115
    %v2117 = vrcp.pop %v2110
    %v2118 = vmul.f32 %v2098, %v2117
    %2123 = vrot.lane.b32.xlu0 %v2056, 10
    %v2124 = vpop.permute.xlu0 %2123
    %2125 = vrot.lane.b32.xlu0 %v2061, 10
    %v2126 = vpop.permute.xlu0 %2125
    %2127 = vrot.lane.b32.xlu0 %v2066, 10
    %v2128 = vpop.permute.xlu0 %2127
    %2129 = vrot.lane.b32.xlu0 %v2071, 10
    %v2130 = vpop.permute.xlu0 %2129
    %v2135 = vsel %vm2074, %v2112, %v2124
    %v2136 = vsel %vm2074, %v2114, %v2126
    %v2137 = vsel %vm2074, %v2116, %v2128
    %v2138 = vsel %vm2074, %v2118, %v2130
    %vm2139 = vcmask 162816
    %2140 = vst.msk [vmem:[#allocation7] sm:$0xff] %vm2139, %v2135
    %2141 = vst.msk [vmem:[#allocation7 + $0x8] sm:$0xff] %vm2139, %v2136
    %2142 = vst.msk [vmem:[#allocation7 + $0x10] sm:$0xff] %vm2139, %v2137
    %2143 = vst.msk [vmem:[#allocation7 + $0x18] sm:$0xff] %vm2139, %v2138
    // Predicated region
    $region38: #{tpu_custom_call.1} parent=1 // pred_check
      _
    $region39: #{tpu_custom_call.1} parent=1 // pred_check_branch
      %2145 = sbr.rel (0) target = $region41
    $region40: #{tpu_custom_call.1} parent=1 // pred_region
      %s2147 = ssub.s32 512, 384
      %2148 = vsyncadd [#allocation4], %s2147
      %s2149 = sshll.u32 [#allocation7], 4
      %s2150 = int_to_ptr.vmem [resolvable:$true] %s2149
      %2155 = dma.vmem_to_hbm [thread:$0]  %s2150, 384, %s7, [#allocation4], 128, 128, 8
    $region41: #{tpu_custom_call.1} parent=1 // pred_fallthru
      _
    // Predicated region
    $region42: #{tpu_custom_call.1} parent=1 // pred_check
      _
    $region43: #{tpu_custom_call.1} parent=1 // pred_check_branch
      %2157 = sbr.rel (0) target = $region45
    $region44: #{tpu_custom_call.1} parent=1 // pred_region
      %2158 = dma.done [#allocation4], 512
    $region45: #{tpu_custom_call.1} parent=1 // pred_fallthru
      _
    %2159 = vsyncpa [#allocation3], 1
    %2160 = vsyncpa [#allocation6], 1
    %2161 = vsyncpa [#allocation4], 1

</llo_original>
